<compile_context>
chip_gen: v7x
topology: tpu7x:2x2x1
jax: 0.10.0
libtpu: 0.0.40
codegen_flags: <defaults>
</compile_context>

<pallas_src>
import math
import functools
import itertools
from dataclasses import dataclass

import jax
import jax.numpy as jnp
from jax import lax
from jax.experimental import pallas as pl
from jax.experimental.pallas import tpu as pltpu

COMPUTE_DTYPE = jnp.bfloat16  # MXU-native matmul dtype (f32 accumulation)


@dataclass
class TokenSequenceInfo:
    codebook_size: int
    num_quantizers: int
    unique_consecutive: bool


# ----------------------------------------------------------------------------- #
# small helpers
# ----------------------------------------------------------------------------- #
def ceil_div(a, b):
    return -(-a // b)


def round_down_nearest_multiple(n, m):
    return (n // m) * m


def _pick_row_tile(rows, max_tile=256):
    """Largest row tile <= max_tile that divides `rows` and is a multiple of 8
    (or the full row count when nothing suitable exists -- still a legal block)."""
    if rows <= max_tile:
        return rows
    for t in range(max_tile, 7, -1):
        if rows % t == 0 and t % 8 == 0:
            return t
    return rows


def _layer_norm(x, g):
    """Gamma-only LayerNorm on a (rows, D) f32 value (in-kernel)."""
    mu = jnp.mean(x, axis=-1, keepdims=True)
    var = jnp.mean((x - mu) ** 2, axis=-1, keepdims=True)
    return (x - mu) * lax.rsqrt(var + 1e-5) * g


# ----------------------------------------------------------------------------- #
# Fused attention block:  LN -> QKV -> causal MHA (all heads) -> Wo -> residual
# ----------------------------------------------------------------------------- #
def _attn_block_kernel(x_ref, g_ref, wqkv_ref, wo_ref, o_ref, *, heads):
    x = x_ref[0]                               # (S, D) f32 residual stream
    S, D = x.shape
    dh = D // heads
    scale = 1.0 / math.sqrt(dh)

    h = _layer_norm(x, g_ref[...])             # pre-LN, f32

    # Single lane-dense fused QKV projection on the MXU (bf16 in, f32 acc).
    qkv = jnp.dot(h.astype(COMPUTE_DTYPE), wqkv_ref[...],
                  preferred_element_type=jnp.float32)        # (S, 3D)

    row = lax.broadcasted_iota(jnp.int32, (S, S), 0)
    col = lax.broadcasted_iota(jnp.int32, (S, S), 1)
    causal = col <= row

    o_sum = jnp.zeros((S, D), jnp.float32)
    for hh in range(heads):                    # static unroll; one kernel launch
        qh = qkv[:, hh * dh:(hh + 1) * dh]
        kh = qkv[:, D + hh * dh:D + (hh + 1) * dh]
        vh = qkv[:, 2 * D + hh * dh:2 * D + (hh + 1) * dh]

        # QK^T without an in-kernel transpose: contract last axis of both sides.
        s = lax.dot_general(qh, kh, (((1,), (1,)), ((), ())),
                            preferred_element_type=jnp.float32) * scale
        s = jnp.where(causal, s, -1e30)        # f32-safe large negative
        s = s - jnp.max(s, axis=-1, keepdims=True)
        p = jnp.exp(s)
        p = p * pl.reciprocal(jnp.sum(p, axis=-1, keepdims=True), approx=True)

        oh = jnp.dot(p.astype(COMPUTE_DTYPE), vh.astype(COMPUTE_DTYPE),
                     preferred_element_type=jnp.float32)     # (S, dh)

        # Fold the output projection into the head loop:
        #   attn @ Wo == sum_h  attn_h @ Wo[h*dh:(h+1)*dh, :]
        o_sum = o_sum + jnp.dot(oh.astype(COMPUTE_DTYPE),
                                wo_ref[hh * dh:(hh + 1) * dh, :],
                                preferred_element_type=jnp.float32)

    o_ref[0] = x + o_sum                       # residual add fused in-kernel


def fused_attention_block(x, gamma, wqkv, wo, heads):
    """x: (B, S, D) f32; wqkv: (D, 3D) bf16; wo: (D, D) bf16 -> (B, S, D) f32."""
    B, S, D = x.shape
    kernel = functools.partial(_attn_block_kernel, heads=heads)
    return pl.pallas_call(
        kernel,
        out_shape=jax.ShapeDtypeStruct((B, S, D), jnp.float32),
        grid=(B,),
        in_specs=[
            pl.BlockSpec((1, S, D), lambda i: (i, 0, 0)),
            pl.BlockSpec((1, D), lambda i: (0, 0)),
            pl.BlockSpec((D, 3 * D), lambda i: (0, 0)),
            pl.BlockSpec((D, D), lambda i: (0, 0)),
        ],
        out_specs=pl.BlockSpec((1, S, D), lambda i: (i, 0, 0)),
        compiler_params=pltpu.CompilerParams(dimension_semantics=("parallel",)),
    )(x, gamma.reshape(1, D).astype(jnp.float32), wqkv, wo)


# ----------------------------------------------------------------------------- #
# Fused feed-forward block:  LN -> W1 -> GEGLU -> W2 -> residual
# ----------------------------------------------------------------------------- #
def _ffn_block_kernel(x_ref, g_ref, w1_ref, w2_ref, o_ref, *, hidden):
    x = x_ref[...]                              # (tm, D) f32
    h = _layer_norm(x, g_ref[...])
    u = jnp.dot(h.astype(COMPUTE_DTYPE), w1_ref[...],
                preferred_element_type=jnp.float32)          # (tm, 2*hidden)
    val = u[:, :hidden]
    gate = u[:, hidden:]
    act = val * jax.nn.gelu(gate, approximate=True)          # GEGLU (tanh gelu)
    o = jnp.dot(act.astype(COMPUTE_DTYPE), w2_ref[...],
                preferred_element_type=jnp.float32)          # (tm, D)
    o_ref[...] = x + o                          # residual add fused in-kernel


def fused_ffn_block(x2d, gamma, w1, w2):
    """x2d: (R, D) f32; w1: (D, 2H) bf16; w2: (H, D) bf16 -> (R, D) f32."""
    R, D = x2d.shape
    hidden = w2.shape[0]
    tm = _pick_row_tile(R)
    kernel = functools.partial(_ffn_block_kernel, hidden=hidden)
    return pl.pallas_call(
        kernel,
        out_shape=jax.ShapeDtypeStruct((R, D), jnp.float32),
        grid=(R // tm,),
        in_specs=[
            pl.BlockSpec((tm, D), lambda i: (i, 0)),
            pl.BlockSpec((1, D), lambda i: (0, 0)),
            pl.BlockSpec(w1.shape, lambda i: (0, 0)),
            pl.BlockSpec(w2.shape, lambda i: (0, 0)),
        ],
        out_specs=pl.BlockSpec((tm, D), lambda i: (i, 0)),
        compiler_params=pltpu.CompilerParams(dimension_semantics=("parallel",)),
    )(x2d, gamma.reshape(1, D).astype(jnp.float32), w1, w2)


# ----------------------------------------------------------------------------- #
# Final LayerNorm (one call per forward)
# ----------------------------------------------------------------------------- #
def _layernorm_kernel(x_ref, g_ref, o_ref):
    o_ref[...] = _layer_norm(x_ref[...], g_ref[...])


def pallas_layernorm(x2d, gamma):
    R, D = x2d.shape
    tm = _pick_row_tile(R)
    return pl.pallas_call(
        _layernorm_kernel,
        out_shape=jax.ShapeDtypeStruct((R, D), jnp.float32),
        grid=(R // tm,),
        in_specs=[
            pl.BlockSpec((tm, D), lambda i: (i, 0)),
            pl.BlockSpec((1, D), lambda i: (0, 0)),
        ],
        out_specs=pl.BlockSpec((tm, D), lambda i: (i, 0)),
        compiler_params=pltpu.CompilerParams(dimension_semantics=("parallel",)),
    )(x2d.astype(jnp.float32), gamma.reshape(1, D).astype(jnp.float32))


# ----------------------------------------------------------------------------- #
# Per-quantizer logit heads:  einsum('q c d, q m d -> q m c'),
# with weights pre-transposed to (q, d, c_pad) and c padded to a lane multiple.
# ----------------------------------------------------------------------------- #
def _logits_kernel(x_ref, w_ref, o_ref):
    # x: (1, M, D) bf16, w: (1, D, Cp) bf16 -> o: (1, M, Cp) f32 (lane-dense store)
    o_ref[0] = jnp.dot(x_ref[0], w_ref[0], preferred_element_type=jnp.float32)


def pallas_per_quantizer_logits(x, w_t_pad):
    """x: (Q, M, D); w_t_pad: (Q, D, Cp) bf16 -> (Q, M, Cp) f32; grid over Q."""
    Q, M, D = x.shape
    _, _, Cp = w_t_pad.shape
    return pl.pallas_call(
        _logits_kernel,
        out_shape=jax.ShapeDtypeStruct((Q, M, Cp), jnp.float32),
        grid=(Q,),
        in_specs=[
            pl.BlockSpec((1, M, D), lambda i: (i, 0, 0)),
            pl.BlockSpec((1, D, Cp), lambda i: (i, 0, 0)),
        ],
        out_specs=pl.BlockSpec((1, M, Cp), lambda i: (i, 0, 0)),
        compiler_params=pltpu.CompilerParams(dimension_semantics=("parallel",)),
    )(x.astype(COMPUTE_DTYPE), w_t_pad)


def _prep_logit_weight(w, lane=128):
    """(Q, C, D) f32 -> pre-transposed, lane-padded (Q, D, Cp) bf16 plus C."""
    Q, C, D = w.shape
    Cp = ceil_div(C, lane) * lane
    wt = jnp.transpose(w, (0, 2, 1))                 # (Q, D, C)
    wt = jnp.pad(wt, ((0, 0), (0, 0), (0, Cp - C)))  # (Q, D, Cp)
    return wt.astype(COMPUTE_DTYPE), C


# ----------------------------------------------------------------------------- #
# Transformer built from the fused Pallas kernels
# ----------------------------------------------------------------------------- #
def transformer_forward(x, tparams, heads):
    """x: (B, S, D) f32 -> (B, S, D) f32. Pre-LN causal MHA + GEGLU FF."""
    B, S, D = x.shape
    for layer in tparams["layers"]:
        x = fused_attention_block(x, layer["attn_norm_g"], layer["wqkv"],
                                  layer["wo"], heads)
        x = fused_ffn_block(x.reshape(B * S, D), layer["ff_norm_g"],
                            layer["w1"], layer["w2"]).reshape(B, S, D)
    x = pallas_layernorm(x.reshape(B * S, D), tparams["final_norm_g"]).reshape(B, S, D)
    return x


# ----------------------------------------------------------------------------- #
# TokenConditionedTransformer forward
# ----------------------------------------------------------------------------- #
def token_conditioned_forward(all_token_ids, params, sequences, heads,
                              return_only_final_seq_logits=False):
    b = all_token_ids[0].shape[0]
    dim = params["start_tokens"][0].shape[-1]

    # rearrange(t, 'b ... -> b (...)')
    all_ids = [ids.reshape(ids.shape[0], -1) for ids in all_token_ids]
    assert len(all_ids) == len(sequences)

    tokens, start_tokens, split_at = [], [], []
    for idx, (seq, ids) in enumerate(zip(sequences, all_ids)):
        if seq.num_quantizers > 1:
            n_rep = ceil_div(ids.shape[-1], seq.num_quantizers)
            offsets = seq.codebook_size * jnp.arange(seq.num_quantizers, dtype=ids.dtype)
            offsets = jnp.tile(offsets, n_rep)[: ids.shape[-1]][None, :]
            ids = ids + offsets

        # get_embeds(embedding, token_ids, pad_id=-1): JAX glue (gather)
        table = params["embeddings"][idx]
        pad_mask = ids != -1
        safe_ids = jnp.where(pad_mask, ids, 0)
        emb = table[safe_ids] * pad_mask[..., None].astype(table.dtype)
        tokens.append(emb)

        start_tokens.append(
            jnp.broadcast_to(params["start_tokens"][idx][None, None, :], (b, 1, dim))
        )
        n_tokens = emb.shape[1] + 1
        split_at.append(n_tokens if len(split_at) == 0 else split_at[-1] + n_tokens)

    interleaved = list(itertools.chain(*zip(start_tokens, tokens)))
    x = jnp.concatenate(interleaved, axis=1)  # (b, S_total, dim)

    # grad_shrink is identity in the forward pass; transformer runs on fused
    # Pallas kernels (two calls per layer).
    x = transformer_forward(x, params["transformer"], heads)

    split_at = split_at[:-1]
    chunks = jnp.split(x, split_at, axis=1)
    all_pred_tokens = [c[:, :-1] for c in chunks[:-1]] + [chunks[-1]]

    all_logits = []
    for index, (seq, pred_tokens, w) in enumerate(
        zip(sequences, all_pred_tokens, params["logit_weights"])
    ):
        if return_only_final_seq_logits and index != len(sequences) - 1:
            all_logits.append(None)
            continue

        wt_pad, c = _prep_logit_weight(w)     # (q, d, c_pad) bf16, lane-dense

        n = pred_tokens.shape[1]
        q = seq.num_quantizers
        d = pred_tokens.shape[-1]
        nq = round_down_nearest_multiple(n, q)
        pt_g = pred_tokens[:, :nq]            # (b, nq, d)
        pt_r = pred_tokens[:, nq:]            # (b, r, d)

        # einsum('q c d, b n q d -> b n q c') as grid-over-q lane-dense matmuls
        n_groups = nq // q
        xg = (
            pt_g.reshape(b, n_groups, q, d)
            .transpose(2, 0, 1, 3)
            .reshape(q, b * n_groups, d)
        )
        lg = pallas_per_quantizer_logits(xg, wt_pad)[..., :c]   # (q, b*n, c)
        lg = (
            lg.reshape(q, b, n_groups, c)
            .transpose(1, 2, 0, 3)
            .reshape(b, nq, c)
        )

        r = pt_r.shape[1]
        if r > 0:
            # einsum('q c d, b q d -> b q c') with the first r quantizer heads
            xr = pt_r.transpose(1, 0, 2)                        # (r, b, d)
            lr = pallas_per_quantizer_logits(xr, wt_pad[:r])[..., :c]  # (r, b, c)
            lr = lr.transpose(1, 0, 2)                          # (b, r, c)
            logits = jnp.concatenate([lg, lr], axis=1)
        else:
            logits = lg
        all_logits.append(logits)

    return all_logits


# ----------------------------------------------------------------------------- #
# Deterministic parameter construction (synthetic, mirrors __init__ shapes)
# ----------------------------------------------------------------------------- #
def init_params(key, sequences, dim, depth, heads, ff_mult=4):
    hidden = dim * ff_mult
    inner = dim  # dim_head * heads with dim_head = dim // heads
    counter = itertools.count()

    def nrm(shape, scale=1.0):
        k = jax.random.fold_in(key, next(counter))
        return scale * jax.random.normal(k, shape, dtype=jnp.float32)

    params = {"start_tokens": [], "embeddings": [], "logit_weights": []}
    for seq in sequences:
        cbe = seq.codebook_size + 1  # codebook_size_with_eos
        params["start_tokens"].append(nrm((dim,)))
        params["embeddings"].append(nrm((cbe * seq.num_quantizers, dim)))
        params["logit_weights"].append(nrm((seq.num_quantizers, cbe, dim)))

    layers = []
    for _ in range(depth):
        layers.append(
            dict(
                attn_norm_g=jnp.ones((dim,), jnp.float32),
                # fused QKV weight (wq|wk|wv), stored bf16 (halved HBM traffic)
                wqkv=nrm((dim, 3 * inner), 0.02).astype(COMPUTE_DTYPE),
                wo=nrm((inner, dim), 0.02).astype(COMPUTE_DTYPE),
                ff_norm_g=jnp.ones((dim,), jnp.float32),
                w1=nrm((dim, 2 * hidden), 0.02).astype(COMPUTE_DTYPE),
                w2=nrm((hidden, dim), 0.02).astype(COMPUTE_DTYPE),
            )
        )
    params["transformer"] = dict(layers=layers,
                                 final_norm_g=jnp.ones((dim,), jnp.float32))
    return params


# ----------------------------------------------------------------------------- #
if __name__ == "__main__":
    key = jax.random.PRNGKey(0)

    # Two token sequences: "semantic" (1 quantizer) and "coarse acoustic" (2 quantizers)
    sequences = [
        TokenSequenceInfo(codebook_size=16, num_quantizers=1, unique_consecutive=True),
        TokenSequenceInfo(codebook_size=16, num_quantizers=2, unique_consecutive=False),
    ]
    dim, depth, heads = 128, 2, 4
    batch = 2

    k_par, k_id0, k_id1 = jax.random.split(key, 3)
    params = init_params(k_par, sequences, dim, depth, heads)

    # all_token_ids: first 2-D (b, n_steps), second 3-D (b, n_steps, num_quantizers)
    ids0 = jax.random.randint(k_id0, (batch, 6), 0, sequences[0].codebook_size, dtype=jnp.int32)
    ids1 = jax.random.randint(k_id1, (batch, 4, 2), 0, sequences[1].codebook_size, dtype=jnp.int32)

    logits = token_conditioned_forward([ids0, ids1], params, sequences, heads)
    logits = [jax.block_until_ready(l) for l in logits]

    # sanity on output shapes: (b, n_pred_tokens, codebook_size+1)
    assert logits[0].shape == (batch, 6, sequences[0].codebook_size + 1)
    assert logits[1].shape == (batch, 9, sequences[1].codebook_size + 1)
    assert all(bool(jnp.all(jnp.isfinite(l))) for l in logits)

    print("KERNEL_OK")
</pallas_src>

<mosaic_0001>
module attributes {stable_mosaic.version = 11 : i64} {
  func.func @_attn_block_kernel(%arg0: i32, %arg1: memref<1x16x128xf32, #tpu.memory_space<vmem>>, %arg2: memref<1x128xf32, #tpu.memory_space<vmem>>, %arg3: memref<128x384xbf16, #tpu.memory_space<vmem>>, %arg4: memref<128x128xbf16, #tpu.memory_space<vmem>>, %arg5: memref<1x16x128xf32, #tpu.memory_space<vmem>>) attributes {dimension_semantics = [#tpu.dimension_semantics<parallel>], iteration_bounds = array<i64: 2>, scalar_prefetch = 0 : i64, scratch_operands = 0 : i64, tpu.core_type = #tpu.core_type<tc>, window_params = [{transform_indices = @transform_0, window_bounds = array<i64: 1, 16, 128>}, {pipeline_mode = #tpu.pipeline_mode<synchronous>, transform_indices = @transform_1, window_bounds = array<i64: 1, 128>}, {pipeline_mode = #tpu.pipeline_mode<synchronous>, transform_indices = @transform_2, window_bounds = array<i64: 128, 384>}, {pipeline_mode = #tpu.pipeline_mode<synchronous>, transform_indices = @transform_3, window_bounds = array<i64: 128, 128>}, {transform_indices = @transform_4, window_bounds = array<i64: 1, 16, 128>}]} {
    %c0 = arith.constant 0 : index
    %c0_0 = arith.constant 0 : index
    %c0_1 = arith.constant 0 : index
    %0 = vector.load %arg1[%c0, %c0_0, %c0_1] : memref<1x16x128xf32, #tpu.memory_space<vmem>>, vector<1x16x128xf32>
    %1 = vector.shape_cast %0 : vector<1x16x128xf32> to vector<16x128xf32>
    %c0_2 = arith.constant 0 : index
    %c0_3 = arith.constant 0 : index
    %2 = vector.load %arg2[%c0_2, %c0_3] : memref<1x128xf32, #tpu.memory_space<vmem>>, vector<1x128xf32>
    %cst = arith.constant dense<0.000000e+00> : vector<16xf32>
    %3 = vector.multi_reduction <add>, %1, %cst [1] : vector<16x128xf32> to vector<16xf32>
    %4 = vector.shape_cast %3 : vector<16xf32> to vector<16x1xf32>
    %cst_4 = arith.constant 1.280000e+02 : f32
    %5 = vector.broadcast %cst_4 : f32 to vector<16x1xf32>
    %6 = arith.divf %4, %5 : vector<16x1xf32>
    %7 = vector.broadcast %6 : vector<16x1xf32> to vector<16x128xf32>
    %8 = arith.subf %1, %7 : vector<16x128xf32>
    %9 = arith.mulf %8, %8 : vector<16x128xf32>
    %cst_5 = arith.constant dense<0.000000e+00> : vector<16xf32>
    %10 = vector.multi_reduction <add>, %9, %cst_5 [1] : vector<16x128xf32> to vector<16xf32>
    %11 = vector.shape_cast %10 : vector<16xf32> to vector<16x1xf32>
    %cst_6 = arith.constant 1.280000e+02 : f32
    %12 = vector.broadcast %cst_6 : f32 to vector<16x1xf32>
    %13 = arith.divf %11, %12 : vector<16x1xf32>
    %14 = vector.broadcast %6 : vector<16x1xf32> to vector<16x128xf32>
    %15 = arith.subf %1, %14 : vector<16x128xf32>
    %cst_7 = arith.constant 9.99999974E-6 : f32
    %16 = vector.broadcast %cst_7 : f32 to vector<16x1xf32>
    %17 = arith.addf %13, %16 : vector<16x1xf32>
    %18 = math.rsqrt %17 : vector<16x1xf32>
    %19 = vector.broadcast %18 : vector<16x1xf32> to vector<16x128xf32>
    %20 = arith.mulf %15, %19 : vector<16x128xf32>
    %21 = vector.broadcast %2 : vector<1x128xf32> to vector<16x128xf32>
    %22 = arith.mulf %20, %21 : vector<16x128xf32>
    %23 = arith.truncf %22 : vector<16x128xf32> to vector<16x128xbf16>
    %c0_8 = arith.constant 0 : index
    %c0_9 = arith.constant 0 : index
    %24 = vector.load %arg3[%c0_8, %c0_9] : memref<128x384xbf16, #tpu.memory_space<vmem>>, vector<128x384xbf16>
    %cst_10 = arith.constant dense<0.000000e+00> : vector<16x384xf32>
    %25 = tpu.matmul %23, %24, %cst_10 {dimension_numbers = #tpu.dot_dimension_numbers<[1], [0], [0], [1], [0, 0, 1, 1], [], []>} : vector<16x128xbf16>, vector<128x384xbf16>, vector<16x384xf32> -> vector<16x384xf32>
    %26 = tpu.iota {dimensions = array<i32: 0>} : vector<16x16xi32>
    %27 = tpu.iota {dimensions = array<i32: 1>} : vector<16x16xi32>
    %28 = arith.cmpi sle, %27, %26 : vector<16x16xi32>
    %cst_11 = arith.constant 0.000000e+00 : f32
    %29 = vector.broadcast %cst_11 : f32 to vector<16x128xf32>
    %30 = vector.extract_strided_slice %25 {offsets = [0, 0], sizes = [16, 32], strides = [1, 1]} : vector<16x384xf32> to vector<16x32xf32>
    %31 = vector.extract_strided_slice %25 {offsets = [0, 128], sizes = [16, 32], strides = [1, 1]} : vector<16x384xf32> to vector<16x32xf32>
    %32 = vector.extract_strided_slice %25 {offsets = [0, 256], sizes = [16, 32], strides = [1, 1]} : vector<16x384xf32> to vector<16x32xf32>
    %cst_12 = arith.constant dense<0.000000e+00> : vector<16x16xf32>
    %33 = tpu.matmul %30, %31, %cst_12 {dimension_numbers = #tpu.dot_dimension_numbers<[1], [1], [0], [0], [0, 0, 1, 0], [], []>} : vector<16x32xf32>, vector<16x32xf32>, vector<16x16xf32> -> vector<16x16xf32>
    %cst_13 = arith.constant 0.176776692 : f32
    %34 = vector.broadcast %cst_13 : f32 to vector<16x16xf32>
    %35 = arith.mulf %33, %34 : vector<16x16xf32>
    %cst_14 = arith.constant -1.000000e+30 : f32
    %36 = vector.broadcast %cst_14 : f32 to vector<16x16xf32>
    %37 = arith.select %28, %35, %36 : vector<16x16xi1>, vector<16x16xf32>
    %cst_15 = arith.constant dense<0xFF800000> : vector<16xf32>
    %38 = vector.multi_reduction <maximumf>, %37, %cst_15 [1] : vector<16x16xf32> to vector<16xf32>
    %39 = vector.shape_cast %38 : vector<16xf32> to vector<16x1xf32>
    %40 = vector.broadcast %39 : vector<16x1xf32> to vector<16x16xf32>
    %41 = arith.subf %37, %40 : vector<16x16xf32>
    %42 = math.exp %41 : vector<16x16xf32>
    %cst_16 = arith.constant dense<0.000000e+00> : vector<16xf32>
    %43 = vector.multi_reduction <add>, %42, %cst_16 [1] : vector<16x16xf32> to vector<16xf32>
    %44 = vector.shape_cast %43 : vector<16xf32> to vector<16x1xf32>
    %45 = tpu.reciprocal %44 {approx = true} : vector<16x1xf32> -> vector<16x1xf32>
    %46 = vector.broadcast %45 : vector<16x1xf32> to vector<16x16xf32>
    %47 = arith.mulf %42, %46 : vector<16x16xf32>
    %48 = arith.truncf %47 : vector<16x16xf32> to vector<16x16xbf16>
    %49 = arith.truncf %32 : vector<16x32xf32> to vector<16x32xbf16>
    %cst_17 = arith.constant dense<0.000000e+00> : vector<16x32xf32>
    %50 = tpu.matmul %48, %49, %cst_17 {dimension_numbers = #tpu.dot_dimension_numbers<[1], [0], [0], [1], [0, 0, 1, 1], [], []>} : vector<16x16xbf16>, vector<16x32xbf16>, vector<16x32xf32> -> vector<16x32xf32>
    %51 = arith.truncf %50 : vector<16x32xf32> to vector<16x32xbf16>
    %c0_18 = arith.constant 0 : index
    %c0_19 = arith.constant 0 : index
    %52 = vector.load %arg4[%c0_18, %c0_19] : memref<128x128xbf16, #tpu.memory_space<vmem>>, vector<32x128xbf16>
    %cst_20 = arith.constant dense<0.000000e+00> : vector<16x128xf32>
    %53 = tpu.matmul %51, %52, %cst_20 {dimension_numbers = #tpu.dot_dimension_numbers<[1], [0], [0], [1], [0, 0, 1, 1], [], []>} : vector<16x32xbf16>, vector<32x128xbf16>, vector<16x128xf32> -> vector<16x128xf32>
    %54 = arith.addf %29, %53 : vector<16x128xf32>
    %55 = vector.extract_strided_slice %25 {offsets = [0, 32], sizes = [16, 32], strides = [1, 1]} : vector<16x384xf32> to vector<16x32xf32>
    %56 = vector.extract_strided_slice %25 {offsets = [0, 160], sizes = [16, 32], strides = [1, 1]} : vector<16x384xf32> to vector<16x32xf32>
    %57 = vector.extract_strided_slice %25 {offsets = [0, 288], sizes = [16, 32], strides = [1, 1]} : vector<16x384xf32> to vector<16x32xf32>
    %cst_21 = arith.constant dense<0.000000e+00> : vector<16x16xf32>
    %58 = tpu.matmul %55, %56, %cst_21 {dimension_numbers = #tpu.dot_dimension_numbers<[1], [1], [0], [0], [0, 0, 1, 0], [], []>} : vector<16x32xf32>, vector<16x32xf32>, vector<16x16xf32> -> vector<16x16xf32>
    %cst_22 = arith.constant 0.176776692 : f32
    %59 = vector.broadcast %cst_22 : f32 to vector<16x16xf32>
    %60 = arith.mulf %58, %59 : vector<16x16xf32>
    %cst_23 = arith.constant -1.000000e+30 : f32
    %61 = vector.broadcast %cst_23 : f32 to vector<16x16xf32>
    %62 = arith.select %28, %60, %61 : vector<16x16xi1>, vector<16x16xf32>
    %cst_24 = arith.constant dense<0xFF800000> : vector<16xf32>
    %63 = vector.multi_reduction <maximumf>, %62, %cst_24 [1] : vector<16x16xf32> to vector<16xf32>
    %64 = vector.shape_cast %63 : vector<16xf32> to vector<16x1xf32>
    %65 = vector.broadcast %64 : vector<16x1xf32> to vector<16x16xf32>
    %66 = arith.subf %62, %65 : vector<16x16xf32>
    %67 = math.exp %66 : vector<16x16xf32>
    %cst_25 = arith.constant dense<0.000000e+00> : vector<16xf32>
    %68 = vector.multi_reduction <add>, %67, %cst_25 [1] : vector<16x16xf32> to vector<16xf32>
    %69 = vector.shape_cast %68 : vector<16xf32> to vector<16x1xf32>
    %70 = tpu.reciprocal %69 {approx = true} : vector<16x1xf32> -> vector<16x1xf32>
    %71 = vector.broadcast %70 : vector<16x1xf32> to vector<16x16xf32>
    %72 = arith.mulf %67, %71 : vector<16x16xf32>
    %73 = arith.truncf %72 : vector<16x16xf32> to vector<16x16xbf16>
    %74 = arith.truncf %57 : vector<16x32xf32> to vector<16x32xbf16>
    %cst_26 = arith.constant dense<0.000000e+00> : vector<16x32xf32>
    %75 = tpu.matmul %73, %74, %cst_26 {dimension_numbers = #tpu.dot_dimension_numbers<[1], [0], [0], [1], [0, 0, 1, 1], [], []>} : vector<16x16xbf16>, vector<16x32xbf16>, vector<16x32xf32> -> vector<16x32xf32>
    %76 = arith.truncf %75 : vector<16x32xf32> to vector<16x32xbf16>
    %c32 = arith.constant 32 : index
    %c0_27 = arith.constant 0 : index
    %77 = vector.load %arg4[%c32, %c0_27] : memref<128x128xbf16, #tpu.memory_space<vmem>>, vector<32x128xbf16>
    %cst_28 = arith.constant dense<0.000000e+00> : vector<16x128xf32>
    %78 = tpu.matmul %76, %77, %cst_28 {dimension_numbers = #tpu.dot_dimension_numbers<[1], [0], [0], [1], [0, 0, 1, 1], [], []>} : vector<16x32xbf16>, vector<32x128xbf16>, vector<16x128xf32> -> vector<16x128xf32>
    %79 = arith.addf %54, %78 : vector<16x128xf32>
    %80 = vector.extract_strided_slice %25 {offsets = [0, 64], sizes = [16, 32], strides = [1, 1]} : vector<16x384xf32> to vector<16x32xf32>
    %81 = vector.extract_strided_slice %25 {offsets = [0, 192], sizes = [16, 32], strides = [1, 1]} : vector<16x384xf32> to vector<16x32xf32>
    %82 = vector.extract_strided_slice %25 {offsets = [0, 320], sizes = [16, 32], strides = [1, 1]} : vector<16x384xf32> to vector<16x32xf32>
    %cst_29 = arith.constant dense<0.000000e+00> : vector<16x16xf32>
    %83 = tpu.matmul %80, %81, %cst_29 {dimension_numbers = #tpu.dot_dimension_numbers<[1], [1], [0], [0], [0, 0, 1, 0], [], []>} : vector<16x32xf32>, vector<16x32xf32>, vector<16x16xf32> -> vector<16x16xf32>
    %cst_30 = arith.constant 0.176776692 : f32
    %84 = vector.broadcast %cst_30 : f32 to vector<16x16xf32>
    %85 = arith.mulf %83, %84 : vector<16x16xf32>
    %cst_31 = arith.constant -1.000000e+30 : f32
    %86 = vector.broadcast %cst_31 : f32 to vector<16x16xf32>
    %87 = arith.select %28, %85, %86 : vector<16x16xi1>, vector<16x16xf32>
    %cst_32 = arith.constant dense<0xFF800000> : vector<16xf32>
    %88 = vector.multi_reduction <maximumf>, %87, %cst_32 [1] : vector<16x16xf32> to vector<16xf32>
    %89 = vector.shape_cast %88 : vector<16xf32> to vector<16x1xf32>
    %90 = vector.broadcast %89 : vector<16x1xf32> to vector<16x16xf32>
    %91 = arith.subf %87, %90 : vector<16x16xf32>
    %92 = math.exp %91 : vector<16x16xf32>
    %cst_33 = arith.constant dense<0.000000e+00> : vector<16xf32>
    %93 = vector.multi_reduction <add>, %92, %cst_33 [1] : vector<16x16xf32> to vector<16xf32>
    %94 = vector.shape_cast %93 : vector<16xf32> to vector<16x1xf32>
    %95 = tpu.reciprocal %94 {approx = true} : vector<16x1xf32> -> vector<16x1xf32>
    %96 = vector.broadcast %95 : vector<16x1xf32> to vector<16x16xf32>
    %97 = arith.mulf %92, %96 : vector<16x16xf32>
    %98 = arith.truncf %97 : vector<16x16xf32> to vector<16x16xbf16>
    %99 = arith.truncf %82 : vector<16x32xf32> to vector<16x32xbf16>
    %cst_34 = arith.constant dense<0.000000e+00> : vector<16x32xf32>
    %100 = tpu.matmul %98, %99, %cst_34 {dimension_numbers = #tpu.dot_dimension_numbers<[1], [0], [0], [1], [0, 0, 1, 1], [], []>} : vector<16x16xbf16>, vector<16x32xbf16>, vector<16x32xf32> -> vector<16x32xf32>
    %101 = arith.truncf %100 : vector<16x32xf32> to vector<16x32xbf16>
    %c64 = arith.constant 64 : index
    %c0_35 = arith.constant 0 : index
    %102 = vector.load %arg4[%c64, %c0_35] : memref<128x128xbf16, #tpu.memory_space<vmem>>, vector<32x128xbf16>
    %cst_36 = arith.constant dense<0.000000e+00> : vector<16x128xf32>
    %103 = tpu.matmul %101, %102, %cst_36 {dimension_numbers = #tpu.dot_dimension_numbers<[1], [0], [0], [1], [0, 0, 1, 1], [], []>} : vector<16x32xbf16>, vector<32x128xbf16>, vector<16x128xf32> -> vector<16x128xf32>
    %104 = arith.addf %79, %103 : vector<16x128xf32>
    %105 = vector.extract_strided_slice %25 {offsets = [0, 96], sizes = [16, 32], strides = [1, 1]} : vector<16x384xf32> to vector<16x32xf32>
    %106 = vector.extract_strided_slice %25 {offsets = [0, 224], sizes = [16, 32], strides = [1, 1]} : vector<16x384xf32> to vector<16x32xf32>
    %107 = vector.extract_strided_slice %25 {offsets = [0, 352], sizes = [16, 32], strides = [1, 1]} : vector<16x384xf32> to vector<16x32xf32>
    %cst_37 = arith.constant dense<0.000000e+00> : vector<16x16xf32>
    %108 = tpu.matmul %105, %106, %cst_37 {dimension_numbers = #tpu.dot_dimension_numbers<[1], [1], [0], [0], [0, 0, 1, 0], [], []>} : vector<16x32xf32>, vector<16x32xf32>, vector<16x16xf32> -> vector<16x16xf32>
    %cst_38 = arith.constant 0.176776692 : f32
    %109 = vector.broadcast %cst_38 : f32 to vector<16x16xf32>
    %110 = arith.mulf %108, %109 : vector<16x16xf32>
    %cst_39 = arith.constant -1.000000e+30 : f32
    %111 = vector.broadcast %cst_39 : f32 to vector<16x16xf32>
    %112 = arith.select %28, %110, %111 : vector<16x16xi1>, vector<16x16xf32>
    %cst_40 = arith.constant dense<0xFF800000> : vector<16xf32>
    %113 = vector.multi_reduction <maximumf>, %112, %cst_40 [1] : vector<16x16xf32> to vector<16xf32>
    %114 = vector.shape_cast %113 : vector<16xf32> to vector<16x1xf32>
    %115 = vector.broadcast %114 : vector<16x1xf32> to vector<16x16xf32>
    %116 = arith.subf %112, %115 : vector<16x16xf32>
    %117 = math.exp %116 : vector<16x16xf32>
    %cst_41 = arith.constant dense<0.000000e+00> : vector<16xf32>
    %118 = vector.multi_reduction <add>, %117, %cst_41 [1] : vector<16x16xf32> to vector<16xf32>
    %119 = vector.shape_cast %118 : vector<16xf32> to vector<16x1xf32>
    %120 = tpu.reciprocal %119 {approx = true} : vector<16x1xf32> -> vector<16x1xf32>
    %121 = vector.broadcast %120 : vector<16x1xf32> to vector<16x16xf32>
    %122 = arith.mulf %117, %121 : vector<16x16xf32>
    %123 = arith.truncf %122 : vector<16x16xf32> to vector<16x16xbf16>
    %124 = arith.truncf %107 : vector<16x32xf32> to vector<16x32xbf16>
    %cst_42 = arith.constant dense<0.000000e+00> : vector<16x32xf32>
    %125 = tpu.matmul %123, %124, %cst_42 {dimension_numbers = #tpu.dot_dimension_numbers<[1], [0], [0], [1], [0, 0, 1, 1], [], []>} : vector<16x16xbf16>, vector<16x32xbf16>, vector<16x32xf32> -> vector<16x32xf32>
    %126 = arith.truncf %125 : vector<16x32xf32> to vector<16x32xbf16>
    %c96 = arith.constant 96 : index
    %c0_43 = arith.constant 0 : index
    %127 = vector.load %arg4[%c96, %c0_43] : memref<128x128xbf16, #tpu.memory_space<vmem>>, vector<32x128xbf16>
    %cst_44 = arith.constant dense<0.000000e+00> : vector<16x128xf32>
    %128 = tpu.matmul %126, %127, %cst_44 {dimension_numbers = #tpu.dot_dimension_numbers<[1], [0], [0], [1], [0, 0, 1, 1], [], []>} : vector<16x32xbf16>, vector<32x128xbf16>, vector<16x128xf32> -> vector<16x128xf32>
    %129 = arith.addf %104, %128 : vector<16x128xf32>
    %130 = arith.addf %1, %129 : vector<16x128xf32>
    %c0_45 = arith.constant 0 : index
    %c0_46 = arith.constant 0 : index
    %c0_47 = arith.constant 0 : index
    %131 = vector.load %arg5[%c0_45, %c0_46, %c0_47] : memref<1x16x128xf32, #tpu.memory_space<vmem>>, vector<1x16x128xf32>
    %132 = vector.shape_cast %131 : vector<1x16x128xf32> to vector<16x128xf32>
    %133 = vector.shape_cast %130 : vector<16x128xf32> to vector<1x16x128xf32>
    tpu.vector_store %arg5[%c0_45, %c0_46, %c0_47], %133 {strides = array<i32>} : memref<1x16x128xf32, #tpu.memory_space<vmem>>, vector<1x16x128xf32>,
    return
  }
  func.func @transform_0(%arg0: i32) -> (i32, i32, i32) {
    %c0_i32 = arith.constant 0 : i32
    %c0_i32_0 = arith.constant 0 : i32
    %c0_i32_1 = arith.constant 0 : i32
    return %arg0, %c0_i32, %c0_i32_0 : i32, i32, i32
  }
  func.func @transform_1(%arg0: i32) -> (i32, i32) {
    %c0_i32 = arith.constant 0 : i32
    %c0_i32_0 = arith.constant 0 : i32
    %c0_i32_1 = arith.constant 0 : i32
    return %c0_i32, %c0_i32_0 : i32, i32
  }
  func.func @transform_2(%arg0: i32) -> (i32, i32) {
    %c0_i32 = arith.constant 0 : i32
    %c0_i32_0 = arith.constant 0 : i32
    %c0_i32_1 = arith.constant 0 : i32
    return %c0_i32, %c0_i32_0 : i32, i32
  }
  func.func @transform_3(%arg0: i32) -> (i32, i32) {
    %c0_i32 = arith.constant 0 : i32
    %c0_i32_0 = arith.constant 0 : i32
    %c0_i32_1 = arith.constant 0 : i32
    return %c0_i32, %c0_i32_0 : i32, i32
  }
  func.func @transform_4(%arg0: i32) -> (i32, i32, i32) {
    %c0_i32 = arith.constant 0 : i32
    %c0_i32_0 = arith.constant 0 : i32
    %c0_i32_1 = arith.constant 0 : i32
    return %arg0, %c0_i32, %c0_i32_0 : i32, i32, i32
  }
}

</mosaic_0001>

<llo_original>
// kernel: tpu_custom_call.1
$region0: #{tpu_custom_call.1}
  #allocation0 [shape = 'u32[]', space=smem, size = 0x4, offset = 0x4, fixed_abs, tag = 'smem constant byte address 0x4 - core index']
  #allocation1 [shape = 'u32[144,128]{1,0:T(1,128)}', space=vmem, size = 0x12000, scoped, tag = 'internal scratch']
  %s0 = inlined_call_operand.hbm [shape: f32[2,16,128], index: 0, kind: input, shape index: {}]
  %s1 = inlined_call_operand.vmem [shape: f32[1,128], index: 1, kind: input, shape index: {}]
  %s2 = inlined_call_operand.hbm [shape: bf16[128,384], index: 2, kind: input, shape index: {}]
  %s3 = inlined_call_operand.hbm [shape: bf16[128,128], index: 3, kind: input, shape index: {}]
  %s4 = inlined_call_operand.hbm [shape: f32[2,16,128], index: 4, kind: output, shape index: {}]
  %s5 = sld [smem:[#allocation0]]
  $region61: #{tpu_custom_call.1} parent=0
    _
  %s7 = ssub.s32 1, %s5
  %s8 = scalar_select 0, %s7, %s5
  $region1: #{tpu_custom_call.1} parent=0
    #allocation2 [shape = 'u8[16384]{0}', space=vmem, size = 0x4000, scoped, tag = 'input window, operand 0']
    #allocation3 [shape = 's32[2]{0}', space=sflag, size = 0x8, scoped, tag = 'scoped memory for tpu_custom_call.1']
    #allocation4 [shape = 's32[2]{0}', space=sflag, size = 0x8, scoped, tag = 'scoped memory for tpu_custom_call.1']
    #allocation5 [shape = 'u8[98304]{0}', space=vmem, size = 0x18000, scoped, tag = 'input window, operand 2, single buffered']
    #allocation6 [shape = 's32[1]{0}', space=sflag, size = 0x4, scoped, tag = 'scoped memory for tpu_custom_call.1']
    #allocation7 [shape = 'u8[32768]{0}', space=vmem, size = 0x8000, scoped, tag = 'input window, operand 3, single buffered']
    #allocation8 [shape = 'u8[16384]{0}', space=vmem, size = 0x4000, scoped, tag = 'output window, operand 0']
    %9 = vsyncpa [#allocation3], 0
    %s10 = scalar_lea.sflag [#allocation3], 1
    %11 = vsyncpa %s10, 0
    %12 = vsyncpa [#allocation6], 0
    %13 = vsyncpa [#allocation4], 0
    %s14 = scalar_lea.sflag [#allocation4], 1
    %15 = vsyncpa %s14, 0
    loop: start=0, step=1, limit=4
    $region2: #{tpu_custom_call.1} parent=1 // loop_pre_header
      _
    $region3: #{tpu_custom_call.1} parent=1 // loop_header
      %s17 = sphi 0, %s21
      %p18 = scmp.ge.s32.totalorder %s17, 4
      %s27 = sphi 0, %s29
      %s30 = sphi 0, %s27
      %s31 = sphi 0, %s30
      %s47 = sphi 0, %s31
      %s51 = sphi 0, %s51
      %s53 = sphi 0, %s51
      %s54 = sphi 0, %s53
      %s68 = sphi 0, %s54
      %s72 = sphi 0, %s72
      %s74 = sphi 0, %s72
      %s75 = sphi 0, %s74
      %s89 = sphi 0, %s75
      %s93 = sphi 0, %s93
      %s95 = sphi 0, %s93
      %s96 = sphi 0, %s95
      %s110 = sphi 0, %s96
      %s116 = sphi 0, %s118
      %s119 = sphi 0, %s116
      %s120 = sphi 0, %s119
      %s136 = sphi 0, %s120
    $region4: #{tpu_custom_call.1} parent=1 // loop_header_branch
      %20 = sbr.rel (%p18) target = $region8
    $region5: #{tpu_custom_call.1} parent=1 // loop_body
      %s22 = ssub.s32 %s17, 1
      %s23 = ssub.s32 %s17, 2
      %s24 = sadd.s32 %s17, 1
      %s25 = ssub.s32 %s17, %s24
      %p26 = scmp.eq.s32.totalorder %s25, 0
      %s28 = sadd.s32 %s27, 1
      %s29 = scalar_select %p26, %s27, %s28
      %p32 = pneg %p26
      %p33 = scmp.eq.s32.totalorder %s17, 1
      %p34 = por %p32, %p33
      %p35 = scmp.ne.s32.totalorder %s27, %s30
      %p36 = scmp.eq.s32.totalorder %s17, 0
      %p37 = por %p35, %p36
      %p38 = scmp.ne.s32.totalorder %s27, %s30
      %p39 = scmp.eq.s32.totalorder %s22, 1
      %p40 = por %p38, %p39
      %p41 = scmp.ne.s32.totalorder %s30, %s31
      %p42 = scmp.eq.s32.totalorder %s22, 0
      %p43 = por %p41, %p42
      %p44 = scmp.ne.s32.totalorder %s30, %s31
      %p45 = scmp.eq.s32.totalorder %s23, 1
      %p46 = por %p44, %p45
      %p48 = scmp.ne.s32.totalorder %s31, %s47
      %p49 = scmp.eq.s32.totalorder %s23, 0
      %p50 = por %p48, %p49
      %s52 = sadd.s32 %s51, 1
      %p55 = scmp.eq.s32.totalorder %s17, 1
      %p56 = scmp.ne.s32.totalorder %s51, %s53
      %p57 = scmp.eq.s32.totalorder %s17, 0
      %p58 = por %p56, %p57
      %p59 = scmp.ne.s32.totalorder %s51, %s53
      %p60 = scmp.eq.s32.totalorder %s22, 1
      %p61 = por %p59, %p60
      %p62 = scmp.ne.s32.totalorder %s53, %s54
      %p63 = scmp.eq.s32.totalorder %s22, 0
      %p64 = por %p62, %p63
      %p65 = scmp.ne.s32.totalorder %s53, %s54
      %p66 = scmp.eq.s32.totalorder %s23, 1
      %p67 = por %p65, %p66
      %p69 = scmp.ne.s32.totalorder %s54, %s68
      %p70 = scmp.eq.s32.totalorder %s23, 0
      %p71 = por %p69, %p70
      %s73 = sadd.s32 %s72, 1
      %p76 = scmp.eq.s32.totalorder %s17, 1
      %p77 = scmp.ne.s32.totalorder %s72, %s74
      %p78 = scmp.eq.s32.totalorder %s17, 0
      %p79 = por %p77, %p78
      %p80 = scmp.ne.s32.totalorder %s72, %s74
      %p81 = scmp.eq.s32.totalorder %s22, 1
      %p82 = por %p80, %p81
      %p83 = scmp.ne.s32.totalorder %s74, %s75
      %p84 = scmp.eq.s32.totalorder %s22, 0
      %p85 = por %p83, %p84
      %p86 = scmp.ne.s32.totalorder %s74, %s75
      %p87 = scmp.eq.s32.totalorder %s23, 1
      %p88 = por %p86, %p87
      %p90 = scmp.ne.s32.totalorder %s75, %s89
      %p91 = scmp.eq.s32.totalorder %s23, 0
      %p92 = por %p90, %p91
      %s94 = sadd.s32 %s93, 1
      %p97 = scmp.eq.s32.totalorder %s17, 1
      %p98 = scmp.ne.s32.totalorder %s93, %s95
      %p99 = scmp.eq.s32.totalorder %s17, 0
      %p100 = por %p98, %p99
      %p101 = scmp.ne.s32.totalorder %s93, %s95
      %p102 = scmp.eq.s32.totalorder %s22, 1
      %p103 = por %p101, %p102
      %p104 = scmp.ne.s32.totalorder %s95, %s96
      %p105 = scmp.eq.s32.totalorder %s22, 0
      %p106 = por %p104, %p105
      %p107 = scmp.ne.s32.totalorder %s95, %s96
      %p108 = scmp.eq.s32.totalorder %s23, 1
      %p109 = por %p107, %p108
      %p111 = scmp.ne.s32.totalorder %s96, %s110
      %p112 = scmp.eq.s32.totalorder %s23, 0
      %p113 = por %p111, %p112
      %s114 = ssub.s32 %s17, %s24
      %p115 = scmp.eq.s32.totalorder %s114, 0
      %s117 = sadd.s32 %s116, 1
      %s118 = scalar_select %p115, %s116, %s117
      %p121 = pneg %p115
      %p122 = scmp.eq.s32.totalorder %s17, 1
      %p123 = por %p121, %p122
      %p124 = scmp.ne.s32.totalorder %s116, %s119
      %p125 = scmp.eq.s32.totalorder %s17, 0
      %p126 = por %p124, %p125
      %p127 = scmp.ne.s32.totalorder %s116, %s119
      %p128 = scmp.eq.s32.totalorder %s22, 1
      %p129 = por %p127, %p128
      %p130 = scmp.ne.s32.totalorder %s119, %s120
      %p131 = scmp.eq.s32.totalorder %s22, 0
      %p132 = por %p130, %p131
      %p133 = scmp.ne.s32.totalorder %s119, %s120
      %p134 = scmp.eq.s32.totalorder %s23, 1
      %p135 = por %p133, %p134
      %p137 = scmp.ne.s32.totalorder %s120, %s136
      %p138 = scmp.eq.s32.totalorder %s23, 0
      %p139 = por %p137, %p138
      %p140 = scmp.le.s32.totalorder 1, %s17
      %p141 = scmp.lt.s32.totalorder %s17, 3
      %p142 = pnand %p140, %p141
      %p143 = pneg %p142
      // Predicated region
      $region9: #{tpu_custom_call.1} parent=5 // pred_check
        _
      $region10: #{tpu_custom_call.1} parent=5 // pred_check_branch
        %145 = sbr.rel (%p142) target = $region12
      $region11: #{tpu_custom_call.1} parent=5 // pred_region
        %s146 = ssub.s32 %s17, 1
        // Predicated region
        $region13: #{tpu_custom_call.1} parent=11 // pred_check
          %p147 = pneg %p64
        $region14: #{tpu_custom_call.1} parent=11 // pred_check_branch
          %149 = sbr.rel (%p147) target = $region16
        $region15: #{tpu_custom_call.1} parent=11 // pred_region
          _
        $region16: #{tpu_custom_call.1} parent=11 // pred_fallthru
          _
        // Predicated region
        $region17: #{tpu_custom_call.1} parent=11 // pred_check
          %p150 = pneg %p85
        $region18: #{tpu_custom_call.1} parent=11 // pred_check_branch
          %152 = sbr.rel (%p150) target = $region20
        $region19: #{tpu_custom_call.1} parent=11 // pred_region
          %s154 = ssub.s32 3072, 3072
          %155 = vsyncadd [#allocation6], %s154
          %s156 = sshll.u32 [#allocation5], 4
          %s157 = int_to_ptr.vmem [resolvable:$true] %s156
          %162 = dma.hbm_to_vmem [thread:$0]  %s2, 3072, %s157, [#allocation6], 192, 192, 12
        $region20: #{tpu_custom_call.1} parent=11 // pred_fallthru
          _
        // Predicated region
        $region21: #{tpu_custom_call.1} parent=11 // pred_check
          %p163 = pneg %p106
        $region22: #{tpu_custom_call.1} parent=11 // pred_check_branch
          %165 = sbr.rel (%p163) target = $region24
        $region23: #{tpu_custom_call.1} parent=11 // pred_region
          %s167 = ssub.s32 1024, 1024
          %168 = vsyncadd [#allocation6], %s167
          %s169 = sshll.u32 [#allocation7], 4
          %s170 = int_to_ptr.vmem [resolvable:$true] %s169
          %175 = dma.hbm_to_vmem [thread:$0]  %s3, 1024, %s170, [#allocation6], 64, 64, 4
        $region24: #{tpu_custom_call.1} parent=11 // pred_fallthru
          _
      $region12: #{tpu_custom_call.1} parent=5 // pred_fallthru
        _
      %p176 = scmp.lt.s32.totalorder %s17, 2
      // Predicated region
      $region25: #{tpu_custom_call.1} parent=5 // pred_check
        %p177 = pneg %p176
      $region26: #{tpu_custom_call.1} parent=5 // pred_check_branch
        %179 = sbr.rel (%p177) target = $region28
      $region27: #{tpu_custom_call.1} parent=5 // pred_region
        // Predicated region
        $region29: #{tpu_custom_call.1} parent=27 // pred_check
          %p180 = pneg %p37
        $region30: #{tpu_custom_call.1} parent=27 // pred_check_branch
          %182 = sbr.rel (%p180) target = $region32
        $region31: #{tpu_custom_call.1} parent=27 // pred_region
          %s183 = sand.u32 %s27, 1
          %s184 = scalar_lea.sflag [#allocation3], %s183
          %s185 = sand.u32 %s27, 1
          %s186 = smul.addr %s185, 16
          %s187 = scalar_lea.vmem [#allocation2], %s186
          %s189 = ssub.s32 256, 256
          %190 = vsyncadd %s184, %s189
          %s191 = smul.addr %s17, 2
          %s192 = smul.addr %s191, 128
          %s193 = scalar_lea.hbm %s0, %s192
          %s194 = sshll.u32 %s187, 4
          %s195 = int_to_ptr.vmem [resolvable:$true] %s194
          %200 = dma.hbm_to_vmem [thread:$0]  %s193, 256, %s195, %s184, 128, 128, 8
        $region32: #{tpu_custom_call.1} parent=27 // pred_fallthru
          _
      $region28: #{tpu_custom_call.1} parent=5 // pred_fallthru
        _
      %p201 = scmp.le.s32.totalorder 1, %s17
      %p202 = scmp.lt.s32.totalorder %s17, 3
      %p203 = pnand %p201, %p202
      %p204 = pneg %p203
      // Predicated region
      $region33: #{tpu_custom_call.1} parent=5 // pred_check
        _
      $region34: #{tpu_custom_call.1} parent=5 // pred_check_branch
        %206 = sbr.rel (%p203) target = $region36
      $region35: #{tpu_custom_call.1} parent=5 // pred_region
        %s207 = ssub.s32 %s17, 1
        %s208 = sand.u32 %s30, 1
        %s209 = scalar_lea.sflag [#allocation3], %s208
        %s210 = sand.u32 %s30, 1
        %s211 = smul.addr %s210, 16
        %s212 = scalar_lea.vmem [#allocation2], %s211
        // Predicated region
        $region37: #{tpu_custom_call.1} parent=35 // pred_check
          %p213 = pneg %p43
        $region38: #{tpu_custom_call.1} parent=35 // pred_check_branch
          %215 = sbr.rel (%p213) target = $region40
        $region39: #{tpu_custom_call.1} parent=35 // pred_region
          %216 = dma.done %s209, 256
        $region40: #{tpu_custom_call.1} parent=35 // pred_fallthru
          _
        // Predicated region
        $region41: #{tpu_custom_call.1} parent=35 // pred_check
          %p217 = pneg %p85
        $region42: #{tpu_custom_call.1} parent=35 // pred_check_branch
          %219 = sbr.rel (%p217) target = $region44
        $region43: #{tpu_custom_call.1} parent=35 // pred_region
          %220 = dma.done [#allocation6], 3072
        $region44: #{tpu_custom_call.1} parent=35 // pred_fallthru
          _
        // Predicated region
        $region45: #{tpu_custom_call.1} parent=35 // pred_check
          %p221 = pneg %p106
        $region46: #{tpu_custom_call.1} parent=35 // pred_check_branch
          %223 = sbr.rel (%p221) target = $region48
        $region47: #{tpu_custom_call.1} parent=35 // pred_region
          %224 = dma.done [#allocation6], 1024
        $region48: #{tpu_custom_call.1} parent=35 // pred_fallthru
          _
        %s225 = sand.u32 %s30, 1
        %s226 = scalar_lea.sflag [#allocation3], %s225
        %s227 = sand.u32 %s30, 1
        %s228 = smul.addr %s227, 16
        %s229 = scalar_lea.vmem [#allocation2], %s228
        %p230 = pneg %p43
        %p231 = pneg %p40
        %p232 = pneg %p64
        %p233 = pneg %p61
        %p234 = pneg %p85
        %p235 = pneg %p82
        %p236 = pneg %p106
        %p237 = pneg %p103
        %p238 = pneg %p132
        %p239 = pneg %p129
        %s240 = sand.u32 %s119, 1
        %s241 = scalar_lea.sflag [#allocation4], %s240
        %s242 = sand.u32 %s119, 1
        %s243 = smul.addr %s242, 16
        %s244 = scalar_lea.vmem [#allocation8], %s243
        %v246 = vld [vmem:[%s212] sm:$0xff]
        %v247 = vld [vmem:[%s212 + $0x8] sm:$0xff]
        %v248 = vld [vmem:[%s1] sm:$0x1]
        %249 = vadd.xlane.f32.xlu0 %v246
        %v250 = vpop.xlane.xlu0 %249
        %251 = vadd.xlane.f32.xlu0 %v247
        %v252 = vpop.xlane.xlu0 %251
        %v253 = vrcp.pop 128.0
        %v254 = vmul.f32 %v250, %v253
        %v255 = vmul.f32 %v252, %v253
        %v256 = vsub.f32 %v246, %v254
        %v257 = vsub.f32 %v247, %v255
        %v258 = vmul.f32 %v256, %v256
        %v259 = vmul.f32 %v257, %v257
        %260 = vadd.xlane.f32.xlu0 %v258
        %v261 = vpop.xlane.xlu0 %260
        %262 = vadd.xlane.f32.xlu0 %v259
        %v263 = vpop.xlane.xlu0 %262
        %v264 = vmul.f32 %v261, %v253
        %v265 = vmul.f32 %v263, %v253
        %v266 = vadd.f32 %v264, 1e-05
        %v267 = vadd.f32 %v265, 1e-05
        %v268 = vrsqrt.pop %v266
        %v269 = vrsqrt.pop %v267
        %v270 = vmul.f32 %v256, %v268
        %v271 = vmul.f32 %v257, %v269
        %v273 = vlaneseq
        %v274 = vshrl.u32 %v273, 7
        %v275 = vsub.s32 0, %v274
        %v276 = vrot.slane %v248, %v275
        %v278 = vmul.f32 %v270, %v276
        %v279 = vmul.f32 %v271, %v276
        %v280 = vpack.c.bf16 %v279, %v278
        %v281 = vld [vmem:[#allocation5] sm:$0xff]
        %v282 = vld [vmem:[#allocation5 + $0x8] sm:$0xf]
        %v283 = vld [vmem:[#allocation5 + $0xc] sm:$0xff]
        %v284 = vld [vmem:[#allocation5 + $0x14] sm:$0xf]
        %v285 = vld [vmem:[#allocation5 + $0x18] sm:$0xff]
        %v286 = vld [vmem:[#allocation5 + $0x20] sm:$0xf]
        %v287 = vld [vmem:[#allocation5 + $0x24] sm:$0xff]
        %v288 = vld [vmem:[#allocation5 + $0x2c] sm:$0xf]
        %v289 = vld [vmem:[#allocation5 + $0x30] sm:$0xff]
        %v290 = vld [vmem:[#allocation5 + $0x38] sm:$0xf]
        %v291 = vld [vmem:[#allocation5 + $0x3c] sm:$0xff]
        %v292 = vld [vmem:[#allocation5 + $0x44] sm:$0xf]
        %v293 = vld [vmem:[#allocation5 + $0x48] sm:$0xff]
        %v294 = vld [vmem:[#allocation5 + $0x50] sm:$0xf]
        %v295 = vld [vmem:[#allocation5 + $0x54] sm:$0xff]
        %v296 = vld [vmem:[#allocation5 + $0x5c] sm:$0xf]
        %v297 = vld [vmem:[#allocation5 + $0x60] sm:$0xff]
        %v298 = vld [vmem:[#allocation5 + $0x68] sm:$0xf]
        %v299 = vld [vmem:[#allocation5 + $0x6c] sm:$0xff]
        %v300 = vld [vmem:[#allocation5 + $0x74] sm:$0xf]
        %v301 = vld [vmem:[#allocation5 + $0x78] sm:$0xff]
        %v302 = vld [vmem:[#allocation5 + $0x80] sm:$0xf]
        %v303 = vld [vmem:[#allocation5 + $0x84] sm:$0xff]
        %v304 = vld [vmem:[#allocation5 + $0x8c] sm:$0xf]
        %v305 = vld [vmem:[#allocation5 + $0x90] sm:$0xff]
        %v306 = vld [vmem:[#allocation5 + $0x98] sm:$0xf]
        %v307 = vld [vmem:[#allocation5 + $0x9c] sm:$0xff]
        %v308 = vld [vmem:[#allocation5 + $0xa4] sm:$0xf]
        %v309 = vld [vmem:[#allocation5 + $0xa8] sm:$0xff]
        %v310 = vld [vmem:[#allocation5 + $0xb0] sm:$0xf]
        %v311 = vld [vmem:[#allocation5 + $0xb4] sm:$0xff]
        %v312 = vld [vmem:[#allocation5 + $0xbc] sm:$0xf]
        %v345 = vunpack.c.l.b16 %v281
        %v346 = vunpack.c.h.b16 %v281
        %v347 = vunpack.c.l.b16 %v282
        %v348 = vunpack.c.l.b16 %v283
        %v349 = vunpack.c.h.b16 %v283
        %v350 = vunpack.c.l.b16 %v284
        %v351 = vunpack.c.l.b16 %v285
        %v352 = vunpack.c.h.b16 %v285
        %v353 = vunpack.c.l.b16 %v286
        %v354 = vunpack.c.l.b16 %v287
        %v355 = vunpack.c.h.b16 %v287
        %v356 = vunpack.c.l.b16 %v288
        %v357 = vunpack.c.l.b16 %v289
        %v358 = vunpack.c.h.b16 %v289
        %v359 = vunpack.c.l.b16 %v290
        %v360 = vunpack.c.l.b16 %v291
        %v361 = vunpack.c.h.b16 %v291
        %v362 = vunpack.c.l.b16 %v292
        %v363 = vunpack.c.l.b16 %v293
        %v364 = vunpack.c.h.b16 %v293
        %v365 = vunpack.c.l.b16 %v294
        %v366 = vunpack.c.l.b16 %v295
        %v367 = vunpack.c.h.b16 %v295
        %v368 = vunpack.c.l.b16 %v296
        %v369 = vunpack.c.l.b16 %v297
        %v370 = vunpack.c.h.b16 %v297
        %v371 = vunpack.c.l.b16 %v298
        %v372 = vunpack.c.l.b16 %v299
        %v373 = vunpack.c.h.b16 %v299
        %v374 = vunpack.c.l.b16 %v300
        %v375 = vunpack.c.l.b16 %v301
        %v376 = vunpack.c.h.b16 %v301
        %v377 = vunpack.c.l.b16 %v302
        %v378 = vunpack.c.l.b16 %v303
        %v379 = vunpack.c.h.b16 %v303
        %v380 = vunpack.c.l.b16 %v304
        %v381 = vunpack.c.l.b16 %v305
        %v382 = vunpack.c.h.b16 %v305
        %v383 = vunpack.c.l.b16 %v306
        %v384 = vunpack.c.l.b16 %v307
        %v385 = vunpack.c.h.b16 %v307
        %v386 = vunpack.c.l.b16 %v308
        %v387 = vunpack.c.l.b16 %v309
        %v388 = vunpack.c.h.b16 %v309
        %v389 = vunpack.c.l.b16 %v310
        %v390 = vunpack.c.l.b16 %v311
        %v391 = vunpack.c.h.b16 %v311
        %v392 = vunpack.c.l.b16 %v312
        %v393 = vpack.c.b16 %v348, %v345
        %v394 = vpack.c.b16 %v349, %v346
        %v395 = vpack.c.b16 %v350, %v347
        %v396 = vpack.c.b16 %v354, %v351
        %v397 = vpack.c.b16 %v355, %v352
        %v398 = vpack.c.b16 %v356, %v353
        %v399 = vpack.c.b16 %v360, %v357
        %v400 = vpack.c.b16 %v361, %v358
        %v401 = vpack.c.b16 %v362, %v359
        %v402 = vpack.c.b16 %v366, %v363
        %v403 = vpack.c.b16 %v367, %v364
        %v404 = vpack.c.b16 %v368, %v365
        %v405 = vpack.c.b16 %v372, %v369
        %v406 = vpack.c.b16 %v373, %v370
        %v407 = vpack.c.b16 %v374, %v371
        %v408 = vpack.c.b16 %v378, %v375
        %v409 = vpack.c.b16 %v379, %v376
        %v410 = vpack.c.b16 %v380, %v377
        %v411 = vpack.c.b16 %v384, %v381
        %v412 = vpack.c.b16 %v385, %v382
        %v413 = vpack.c.b16 %v386, %v383
        %v414 = vpack.c.b16 %v390, %v387
        %v415 = vpack.c.b16 %v391, %v388
        %v416 = vpack.c.b16 %v392, %v389
        %441 = vmatprep.subr.bf16.mxu0 %v394
        %442 = vmatpush1.bf16.msra.mxu0 %v393
        %443 = vmatprep.subr.bf16.mxu0 %v397
        %444 = vmatpush1.bf16.msra.mxu0 %v396
        %445 = vmatprep.subr.bf16.mxu0 %v400
        %446 = vmatpush1.bf16.msra.mxu0 %v399
        %447 = vmatprep.subr.bf16.mxu0 %v403
        %448 = vmatpush1.bf16.msra.mxu0 %v402
        %449 = vmatprep.subr.bf16.mxu0 %v406
        %450 = vmatpush1.bf16.msra.mxu0 %v405
        %451 = vmatprep.subr.bf16.mxu0 %v409
        %452 = vmatpush1.bf16.msra.mxu0 %v408
        %453 = vmatprep.subr.bf16.mxu0 %v412
        %454 = vmatpush1.bf16.msra.mxu0 %v411
        %455 = vmatprep.subr.bf16.mxu0 %v415
        %456 = vmatpush1.bf16.msra.mxu0 %v414
        %457 = vmatprep.subr.bf16.mxu0 0
        %458 = vmatpush1.bf16.msra.mxu0 0
        %459 = vmatprep.subr.bf16.mxu0 0
        %460 = vmatpush1.bf16.msra.mxu0 0
        %461 = vmatprep.subr.bf16.mxu0 0
        %462 = vmatpush1.bf16.msra.mxu0 0
        %463 = vmatprep.subr.bf16.mxu0 0
        %464 = vmatpush1.bf16.msra.mxu0 0
        %465 = vmatprep.subr.bf16.mxu0 0
        %466 = vmatpush1.bf16.msra.mxu0 0
        %467 = vmatprep.subr.bf16.mxu0 0
        %468 = vmatpush1.bf16.msra.mxu0 0
        %469 = vmatprep.subr.bf16.mxu0 0
        %470 = vmatpush1.bf16.msra.mxu0 0
        %471 = vmatprep.subr.bf16.mxu0 0
        %472 = vmatpush1.bf16.msra.mxu0 0
        %473 = vmatprep.mubr.bf16.mxu0 0
        %474 = vmatmul.mubr.bf16.gmra.mrb[0].mxu0 %v280
        %v475 = vpop.f32.mrb[0].mxu0
        %v476 = vadd.f32 0.0, %v475
        %v477 = vpop.f32.mrb[0].mxu0
        %v478 = vadd.f32 0.0, %v477
        %v479 = vpop.f32.mrb[0].mxu0
        %v480 = vadd.f32 0.0, %v479
        %v481 = vpop.f32.mrb[0].mxu0
        %v482 = vadd.f32 0.0, %v481
        %483 = vdwg.mxu0
        %484 = vmatprep.subr.bf16.mxu0 0
        %485 = vmatpush1.bf16.msra.mxu0 %v395
        %486 = vmatprep.subr.bf16.mxu0 0
        %487 = vmatpush1.bf16.msra.mxu0 %v398
        %488 = vmatprep.subr.bf16.mxu0 0
        %489 = vmatpush1.bf16.msra.mxu0 %v401
        %490 = vmatprep.subr.bf16.mxu0 0
        %491 = vmatpush1.bf16.msra.mxu0 %v404
        %492 = vmatprep.subr.bf16.mxu0 0
        %493 = vmatpush1.bf16.msra.mxu0 %v407
        %494 = vmatprep.subr.bf16.mxu0 0
        %495 = vmatpush1.bf16.msra.mxu0 %v410
        %496 = vmatprep.subr.bf16.mxu0 0
        %497 = vmatpush1.bf16.msra.mxu0 %v413
        %498 = vmatprep.subr.bf16.mxu0 0
        %499 = vmatpush1.bf16.msra.mxu0 %v416
        %500 = vmatprep.subr.bf16.mxu0 0
        %501 = vmatpush1.bf16.msra.mxu0 0
        %502 = vmatprep.subr.bf16.mxu0 0
        %503 = vmatpush1.bf16.msra.mxu0 0
        %504 = vmatprep.subr.bf16.mxu0 0
        %505 = vmatpush1.bf16.msra.mxu0 0
        %506 = vmatprep.subr.bf16.mxu0 0
        %507 = vmatpush1.bf16.msra.mxu0 0
        %508 = vmatprep.subr.bf16.mxu0 0
        %509 = vmatpush1.bf16.msra.mxu0 0
        %510 = vmatprep.subr.bf16.mxu0 0
        %511 = vmatpush1.bf16.msra.mxu0 0
        %512 = vmatprep.subr.bf16.mxu0 0
        %513 = vmatpush1.bf16.msra.mxu0 0
        %514 = vmatprep.subr.bf16.mxu0 0
        %515 = vmatpush1.bf16.msra.mxu0 0
        %516 = vmatprep.mubr.bf16.mxu0 0
        %517 = vmatmul.mubr.bf16.gmra.mrb[0].mxu0 %v280
        %v518 = vpop.f32.mrb[0].mxu0
        %v519 = vadd.f32 0.0, %v518
        %v520 = vpop.f32.mrb[0].mxu0
        %v521 = vpop.f32.mrb[0].mxu0
        %v522 = vadd.f32 0.0, %v521
        %v523 = vpop.f32.mrb[0].mxu0
        %524 = vdwg.mxu0
        %v525 = vlaneseq
        %v526 = vshrl.u32 %v525, 7
        %v527 = vadd.s32 %v526, 8
        %v528 = vlaneseq
        %v529 = vand.u32 %v528, 127
        %vm530 = vcmp.le.s32.totalorder %v529, %v526
        %vm531 = vcmp.le.s32.totalorder %v529, %v527
        %vm532 = vcmask 261120
        %v534 = vsel %vm532, %v476, 0
        %v537 = vsel %vm532, %v480, 0
        %v540 = vsel %vm532, %v478, 0
        %v543 = vsel %vm532, %v482, 0
        %545 = vmatprep.subr.mxu0 0.0
        %546 = vmatpush1.xpose.msra.mxu0 %v540
        %547 = vmatprep.subr.mxu0 0.0
        %548 = vmatpush1.xpose.msra.mxu0 %v543
        %549 = vmatprep.subr.mxu0 0.0
        %550 = vmatpush1.xpose.msra.mxu0 0.0
        %551 = vmatprep.subr.mxu0 0.0
        %552 = vmatpush1.xpose.msra.mxu0 0.0
        %553 = vmatprep.subr.mxu0 0.0
        %554 = vmatpush1.xpose.msra.mxu0 0.0
        %555 = vmatprep.subr.mxu0 0.0
        %556 = vmatpush1.xpose.msra.mxu0 0.0
        %557 = vmatprep.subr.mxu0 0.0
        %558 = vmatpush1.xpose.msra.mxu0 0.0
        %559 = vmatprep.subr.mxu0 0.0
        %560 = vmatpush1.xpose.msra.mxu0 0.0
        %561 = vmatprep.subr.mxu0 0.0
        %562 = vmatpush1.xpose.msra.mxu0 0.0
        %563 = vmatprep.subr.mxu0 0.0
        %564 = vmatpush1.xpose.msra.mxu0 0.0
        %565 = vmatprep.subr.mxu0 0.0
        %566 = vmatpush1.xpose.msra.mxu0 0.0
        %567 = vmatprep.subr.mxu0 0.0
        %568 = vmatpush1.xpose.msra.mxu0 0.0
        %569 = vmatprep.subr.mxu0 0.0
        %570 = vmatpush1.xpose.msra.mxu0 0.0
        %571 = vmatprep.subr.mxu0 0.0
        %572 = vmatpush1.xpose.msra.mxu0 0.0
        %573 = vmatprep.subr.mxu0 0.0
        %574 = vmatpush1.xpose.msra.mxu0 0.0
        %575 = vmatprep.subr.mxu0 0.0
        %576 = vmatpush1.xpose.msra.mxu0 0.0
        %577 = vmatprep.subr.mxu0 0.0
        %578 = vmatpush1.xpose.msra.mxu0 0.0
        %579 = vmatprep.subr.mxu0 0.0
        %580 = vmatpush1.xpose.msra.mxu0 0.0
        %581 = vmatprep.subr.mxu0 0.0
        %582 = vmatpush1.xpose.msra.mxu0 0.0
        %583 = vmatprep.subr.mxu0 0.0
        %584 = vmatpush1.xpose.msra.mxu0 0.0
        %585 = vmatprep.subr.mxu0 0.0
        %586 = vmatpush1.xpose.msra.mxu0 0.0
        %587 = vmatprep.subr.mxu0 0.0
        %588 = vmatpush1.xpose.msra.mxu0 0.0
        %589 = vmatprep.subr.mxu0 0.0
        %590 = vmatpush1.xpose.msra.mxu0 0.0
        %591 = vmatprep.subr.mxu0 0.0
        %592 = vmatpush1.xpose.msra.mxu0 0.0
        %593 = vmatprep.subr.mxu0 0.0
        %594 = vmatpush1.xpose.msra.mxu0 0.0
        %595 = vmatprep.subr.mxu0 0.0
        %596 = vmatpush1.xpose.msra.mxu0 0.0
        %597 = vmatprep.subr.mxu0 0.0
        %598 = vmatpush1.xpose.msra.mxu0 0.0
        %599 = vmatprep.subr.mxu0 0.0
        %600 = vmatpush1.xpose.msra.mxu0 0.0
        %601 = vmatprep.subr.mxu0 0.0
        %602 = vmatpush1.xpose.msra.mxu0 0.0
        %603 = vmatprep.subr.mxu0 0.0
        %604 = vmatpush1.xpose.msra.mxu0 0.0
        %605 = vmatprep.subr.mxu0 0.0
        %606 = vmatpush1.xpose.msra.mxu0 0.0
        %607 = vmatprep.subr.mxu0 0.0
        %608 = vmatpush1.xpose.msra.mxu0 0.0
        %609 = vmatprep.mubr.f32.mxu0 0.0
        %610 = vmatmul.mubr.f32.gmra.mrb[0].mxu0 %v534
        %v611 = vpop.f32.mrb[0].mxu0
        %v612 = vadd.f32 0.0, %v611
        %v613 = vpop.f32.mrb[0].mxu0
        %614 = vmatprep.mubr.f32.mxu0 0.0
        %615 = vmatmul.mubr.f32.gmra.mrb[0].mxu0 %v537
        %v616 = vpop.f32.mrb[0].mxu0
        %v617 = vadd.f32 0.0, %v616
        %v618 = vpop.f32.mrb[0].mxu0
        %619 = vdwg.mxu0
        %v620 = vmul.f32 %v612, 0.17677669
        %v621 = vmul.f32 %v617, 0.17677669
        %v622 = vsel %vm530, %v620, -1e+30
        %v623 = vsel %vm531, %v621, -1e+30
        %vm624 = vcmask 130048
        %v625 = vsel %vm624, %v622, -inf
        %626 = vmax.xlane.f32.xlu0 %v625
        %v627 = vpop.xlane.xlu0 %626
        %v628 = vsel %vm624, %v623, -inf
        %629 = vmax.xlane.f32.xlu0 %v628
        %v630 = vpop.xlane.xlu0 %629
        %v631 = vsub.f32 %v622, %v627
        %v632 = vsub.f32 %v623, %v630
        %v633 = vmul.f32 %v631, 1.442695
        %v634 = vpow.pop %v633
        %v635 = vmul.f32 %v632, 1.442695
        %v636 = vpow.pop %v635
        %v637 = vsel %vm624, %v634, 0.0
        %638 = vadd.xlane.f32.xlu0 %v637
        %v639 = vpop.xlane.xlu0 %638
        %v640 = vsel %vm624, %v636, 0.0
        %641 = vadd.xlane.f32.xlu0 %v640
        %v642 = vpop.xlane.xlu0 %641
        %v643 = vrcp.pop %v639
        %v644 = vrcp.pop %v642
        %v645 = vmul.f32 %v634, %v643
        %v646 = vmul.f32 %v636, %v644
        %v647 = vpack.c.bf16 %v646, %v645
        %v648 = vpack.c.bf16 %v522, %v519
        %v650 = vsel %vm624, %v647, 0
        %652 = vmatprep.subr.bf16.mxu0 0
        %653 = vmatpush1.bf16.msra.mxu0 %v648
        %654 = vmatprep.subr.bf16.mxu0 0
        %655 = vmatpush1.bf16.msra.mxu0 0
        %656 = vmatprep.subr.bf16.mxu0 0
        %657 = vmatpush1.bf16.msra.mxu0 0
        %658 = vmatprep.subr.bf16.mxu0 0
        %659 = vmatpush1.bf16.msra.mxu0 0
        %660 = vmatprep.subr.bf16.mxu0 0
        %661 = vmatpush1.bf16.msra.mxu0 0
        %662 = vmatprep.subr.bf16.mxu0 0
        %663 = vmatpush1.bf16.msra.mxu0 0
        %664 = vmatprep.subr.bf16.mxu0 0
        %665 = vmatpush1.bf16.msra.mxu0 0
        %666 = vmatprep.subr.bf16.mxu0 0
        %667 = vmatpush1.bf16.msra.mxu0 0
        %668 = vmatprep.subr.bf16.mxu0 0
        %669 = vmatpush1.bf16.msra.mxu0 0
        %670 = vmatprep.subr.bf16.mxu0 0
        %671 = vmatpush1.bf16.msra.mxu0 0
        %672 = vmatprep.subr.bf16.mxu0 0
        %673 = vmatpush1.bf16.msra.mxu0 0
        %674 = vmatprep.subr.bf16.mxu0 0
        %675 = vmatpush1.bf16.msra.mxu0 0
        %676 = vmatprep.subr.bf16.mxu0 0
        %677 = vmatpush1.bf16.msra.mxu0 0
        %678 = vmatprep.subr.bf16.mxu0 0
        %679 = vmatpush1.bf16.msra.mxu0 0
        %680 = vmatprep.subr.bf16.mxu0 0
        %681 = vmatpush1.bf16.msra.mxu0 0
        %682 = vmatprep.subr.bf16.mxu0 0
        %683 = vmatpush1.bf16.msra.mxu0 0
        %684 = vmatprep.mubr.bf16.mxu0 0
        %685 = vmatmul.mubr.bf16.gmra.mrb[0].mxu0 %v650
        %v686 = vpop.f32.mrb[0].mxu0
        %v687 = vadd.f32 0.0, %v686
        %v688 = vpop.f32.mrb[0].mxu0
        %v689 = vpop.f32.mrb[0].mxu0
        %v690 = vadd.f32 0.0, %v689
        %v691 = vpop.f32.mrb[0].mxu0
        %692 = vdwg.mxu0
        %v693 = vpack.c.bf16 %v690, %v687
        %v694 = vld [vmem:[#allocation7] sm:$0xf]
        %v695 = vld [vmem:[#allocation7 + $0x4] sm:$0xf]
        %v696 = vld [vmem:[#allocation7 + $0x8] sm:$0xf]
        %v697 = vld [vmem:[#allocation7 + $0xc] sm:$0xf]
        %698 = vrot.lane.b32.xlu0 %v476, 96
        %v699 = vpop.permute.xlu0 %698
        %700 = vrot.lane.b32.xlu0 %v480, 96
        %v701 = vpop.permute.xlu0 %700
        %702 = vrot.lane.b32.xlu0 %v478, 96
        %v703 = vpop.permute.xlu0 %702
        %704 = vrot.lane.b32.xlu0 %v482, 96
        %v705 = vpop.permute.xlu0 %704
        %v706 = vsel %vm532, %v699, 0
        %v708 = vsel %vm532, %v701, 0
        %v710 = vsel %vm532, %v703, 0
        %v712 = vsel %vm532, %v705, 0
        %714 = vmatprep.subr.mxu0 0.0
        %715 = vmatpush1.xpose.msra.mxu0 %v710
        %716 = vmatprep.subr.mxu0 0.0
        %717 = vmatpush1.xpose.msra.mxu0 %v712
        %718 = vmatprep.subr.mxu0 0.0
        %719 = vmatpush1.xpose.msra.mxu0 0.0
        %720 = vmatprep.subr.mxu0 0.0
        %721 = vmatpush1.xpose.msra.mxu0 0.0
        %722 = vmatprep.subr.mxu0 0.0
        %723 = vmatpush1.xpose.msra.mxu0 0.0
        %724 = vmatprep.subr.mxu0 0.0
        %725 = vmatpush1.xpose.msra.mxu0 0.0
        %726 = vmatprep.subr.mxu0 0.0
        %727 = vmatpush1.xpose.msra.mxu0 0.0
        %728 = vmatprep.subr.mxu0 0.0
        %729 = vmatpush1.xpose.msra.mxu0 0.0
        %730 = vmatprep.subr.mxu0 0.0
        %731 = vmatpush1.xpose.msra.mxu0 0.0
        %732 = vmatprep.subr.mxu0 0.0
        %733 = vmatpush1.xpose.msra.mxu0 0.0
        %734 = vmatprep.subr.mxu0 0.0
        %735 = vmatpush1.xpose.msra.mxu0 0.0
        %736 = vmatprep.subr.mxu0 0.0
        %737 = vmatpush1.xpose.msra.mxu0 0.0
        %738 = vmatprep.subr.mxu0 0.0
        %739 = vmatpush1.xpose.msra.mxu0 0.0
        %740 = vmatprep.subr.mxu0 0.0
        %741 = vmatpush1.xpose.msra.mxu0 0.0
        %742 = vmatprep.subr.mxu0 0.0
        %743 = vmatpush1.xpose.msra.mxu0 0.0
        %744 = vmatprep.subr.mxu0 0.0
        %745 = vmatpush1.xpose.msra.mxu0 0.0
        %746 = vmatprep.subr.mxu0 0.0
        %747 = vmatpush1.xpose.msra.mxu0 0.0
        %748 = vmatprep.subr.mxu0 0.0
        %749 = vmatpush1.xpose.msra.mxu0 0.0
        %750 = vmatprep.subr.mxu0 0.0
        %751 = vmatpush1.xpose.msra.mxu0 0.0
        %752 = vmatprep.subr.mxu0 0.0
        %753 = vmatpush1.xpose.msra.mxu0 0.0
        %754 = vmatprep.subr.mxu0 0.0
        %755 = vmatpush1.xpose.msra.mxu0 0.0
        %756 = vmatprep.subr.mxu0 0.0
        %757 = vmatpush1.xpose.msra.mxu0 0.0
        %758 = vmatprep.subr.mxu0 0.0
        %759 = vmatpush1.xpose.msra.mxu0 0.0
        %760 = vmatprep.subr.mxu0 0.0
        %761 = vmatpush1.xpose.msra.mxu0 0.0
        %762 = vmatprep.subr.mxu0 0.0
        %763 = vmatpush1.xpose.msra.mxu0 0.0
        %764 = vmatprep.subr.mxu0 0.0
        %765 = vmatpush1.xpose.msra.mxu0 0.0
        %766 = vmatprep.subr.mxu0 0.0
        %767 = vmatpush1.xpose.msra.mxu0 0.0
        %768 = vmatprep.subr.mxu0 0.0
        %769 = vmatpush1.xpose.msra.mxu0 0.0
        %770 = vmatprep.subr.mxu0 0.0
        %771 = vmatpush1.xpose.msra.mxu0 0.0
        %772 = vmatprep.subr.mxu0 0.0
        %773 = vmatpush1.xpose.msra.mxu0 0.0
        %774 = vmatprep.subr.mxu0 0.0
        %775 = vmatpush1.xpose.msra.mxu0 0.0
        %776 = vmatprep.subr.mxu0 0.0
        %777 = vmatpush1.xpose.msra.mxu0 0.0
        %778 = vmatprep.mubr.f32.mxu0 0.0
        %779 = vmatmul.mubr.f32.gmra.mrb[0].mxu0 %v706
        %v780 = vpop.f32.mrb[0].mxu0
        %v781 = vadd.f32 0.0, %v780
        %v782 = vpop.f32.mrb[0].mxu0
        %783 = vmatprep.mubr.f32.mxu0 0.0
        %784 = vmatmul.mubr.f32.gmra.mrb[0].mxu0 %v708
        %v785 = vpop.f32.mrb[0].mxu0
        %v786 = vadd.f32 0.0, %v785
        %v787 = vpop.f32.mrb[0].mxu0
        %788 = vdwg.mxu0
        %v789 = vmul.f32 %v781, 0.17677669
        %v790 = vmul.f32 %v786, 0.17677669
        %v791 = vsel %vm530, %v789, -1e+30
        %v792 = vsel %vm531, %v790, -1e+30
        %v793 = vsel %vm624, %v791, -inf
        %794 = vmax.xlane.f32.xlu0 %v793
        %v795 = vpop.xlane.xlu0 %794
        %v796 = vsel %vm624, %v792, -inf
        %797 = vmax.xlane.f32.xlu0 %v796
        %v798 = vpop.xlane.xlu0 %797
        %v799 = vsub.f32 %v791, %v795
        %v800 = vsub.f32 %v792, %v798
        %v801 = vmul.f32 %v799, 1.442695
        %v802 = vpow.pop %v801
        %v803 = vmul.f32 %v800, 1.442695
        %v804 = vpow.pop %v803
        %v805 = vsel %vm624, %v802, 0.0
        %806 = vadd.xlane.f32.xlu0 %v805
        %v807 = vpop.xlane.xlu0 %806
        %v808 = vsel %vm624, %v804, 0.0
        %809 = vadd.xlane.f32.xlu0 %v808
        %v810 = vpop.xlane.xlu0 %809
        %v811 = vrcp.pop %v807
        %v812 = vrcp.pop %v810
        %v813 = vmul.f32 %v802, %v811
        %v814 = vmul.f32 %v804, %v812
        %v815 = vpack.c.bf16 %v814, %v813
        %817 = vrot.lane.b32.xlu0 %v648, 96
        %v818 = vpop.permute.xlu0 %817
        %v821 = vsel %vm624, %v815, 0
        %823 = vmatprep.subr.bf16.mxu0 0
        %824 = vmatpush1.bf16.msra.mxu0 %v818
        %825 = vmatprep.subr.bf16.mxu0 0
        %826 = vmatpush1.bf16.msra.mxu0 0
        %827 = vmatprep.subr.bf16.mxu0 0
        %828 = vmatpush1.bf16.msra.mxu0 0
        %829 = vmatprep.subr.bf16.mxu0 0
        %830 = vmatpush1.bf16.msra.mxu0 0
        %831 = vmatprep.subr.bf16.mxu0 0
        %832 = vmatpush1.bf16.msra.mxu0 0
        %833 = vmatprep.subr.bf16.mxu0 0
        %834 = vmatpush1.bf16.msra.mxu0 0
        %835 = vmatprep.subr.bf16.mxu0 0
        %836 = vmatpush1.bf16.msra.mxu0 0
        %837 = vmatprep.subr.bf16.mxu0 0
        %838 = vmatpush1.bf16.msra.mxu0 0
        %839 = vmatprep.subr.bf16.mxu0 0
        %840 = vmatpush1.bf16.msra.mxu0 0
        %841 = vmatprep.subr.bf16.mxu0 0
        %842 = vmatpush1.bf16.msra.mxu0 0
        %843 = vmatprep.subr.bf16.mxu0 0
        %844 = vmatpush1.bf16.msra.mxu0 0
        %845 = vmatprep.subr.bf16.mxu0 0
        %846 = vmatpush1.bf16.msra.mxu0 0
        %847 = vmatprep.subr.bf16.mxu0 0
        %848 = vmatpush1.bf16.msra.mxu0 0
        %849 = vmatprep.subr.bf16.mxu0 0
        %850 = vmatpush1.bf16.msra.mxu0 0
        %851 = vmatprep.subr.bf16.mxu0 0
        %852 = vmatpush1.bf16.msra.mxu0 0
        %853 = vmatprep.subr.bf16.mxu0 0
        %854 = vmatpush1.bf16.msra.mxu0 0
        %855 = vmatprep.mubr.bf16.mxu0 0
        %856 = vmatmul.mubr.bf16.gmra.mrb[0].mxu0 %v821
        %v857 = vpop.f32.mrb[0].mxu0
        %v858 = vadd.f32 0.0, %v857
        %v859 = vpop.f32.mrb[0].mxu0
        %v860 = vpop.f32.mrb[0].mxu0
        %v861 = vadd.f32 0.0, %v860
        %v862 = vpop.f32.mrb[0].mxu0
        %863 = vdwg.mxu0
        %v864 = vpack.c.bf16 %v861, %v858
        %v865 = vld [vmem:[#allocation7 + $0x10] sm:$0xf]
        %v866 = vld [vmem:[#allocation7 + $0x14] sm:$0xf]
        %v867 = vld [vmem:[#allocation7 + $0x18] sm:$0xf]
        %v868 = vld [vmem:[#allocation7 + $0x1c] sm:$0xf]
        %v873 = vunpack.c.l.b16 %v865
        %v874 = vunpack.c.l.b16 %v866
        %v875 = vunpack.c.l.b16 %v867
        %v876 = vunpack.c.l.b16 %v868
        %v877 = vpack.c.b16 %v874, %v873
        %v878 = vpack.c.b16 %v876, %v875
        %v882 = vsel %vm532, %v864, 0
        %884 = vmatprep.subr.bf16.mxu0 0
        %885 = vmatpush1.bf16.msra.mxu0 %v877
        %886 = vmatprep.subr.bf16.mxu0 0
        %887 = vmatpush1.bf16.msra.mxu0 %v878
        %888 = vmatprep.subr.bf16.mxu0 0
        %889 = vmatpush1.bf16.msra.mxu0 0
        %890 = vmatprep.subr.bf16.mxu0 0
        %891 = vmatpush1.bf16.msra.mxu0 0
        %892 = vmatprep.subr.bf16.mxu0 0
        %893 = vmatpush1.bf16.msra.mxu0 0
        %894 = vmatprep.subr.bf16.mxu0 0
        %895 = vmatpush1.bf16.msra.mxu0 0
        %896 = vmatprep.subr.bf16.mxu0 0
        %897 = vmatpush1.bf16.msra.mxu0 0
        %898 = vmatprep.subr.bf16.mxu0 0
        %899 = vmatpush1.bf16.msra.mxu0 0
        %900 = vmatprep.subr.bf16.mxu0 0
        %901 = vmatpush1.bf16.msra.mxu0 0
        %902 = vmatprep.subr.bf16.mxu0 0
        %903 = vmatpush1.bf16.msra.mxu0 0
        %904 = vmatprep.subr.bf16.mxu0 0
        %905 = vmatpush1.bf16.msra.mxu0 0
        %906 = vmatprep.subr.bf16.mxu0 0
        %907 = vmatpush1.bf16.msra.mxu0 0
        %908 = vmatprep.subr.bf16.mxu0 0
        %909 = vmatpush1.bf16.msra.mxu0 0
        %910 = vmatprep.subr.bf16.mxu0 0
        %911 = vmatpush1.bf16.msra.mxu0 0
        %912 = vmatprep.subr.bf16.mxu0 0
        %913 = vmatpush1.bf16.msra.mxu0 0
        %914 = vmatprep.subr.bf16.mxu0 0
        %915 = vmatpush1.bf16.msra.mxu0 0
        %916 = vmatprep.mubr.bf16.mxu0 0
        %917 = vmatmul.mubr.bf16.gmra.mrb[0].mxu0 %v882
        %v918 = vpop.f32.mrb[0].mxu0
        %v919 = vadd.f32 0.0, %v918
        %v920 = vpop.f32.mrb[0].mxu0
        %v921 = vpop.f32.mrb[0].mxu0
        %v922 = vadd.f32 0.0, %v921
        %v923 = vpop.f32.mrb[0].mxu0
        %924 = vdwg.mxu0
        %v929 = vunpack.c.l.b16 %v694
        %v930 = vunpack.c.l.b16 %v695
        %v931 = vunpack.c.l.b16 %v696
        %v932 = vunpack.c.l.b16 %v697
        %v933 = vpack.c.b16 %v930, %v929
        %v934 = vpack.c.b16 %v932, %v931
        %v938 = vsel %vm532, %v693, 0
        %940 = vmatprep.subr.bf16.mxu0 0
        %941 = vmatpush1.bf16.msra.mxu0 %v933
        %942 = vmatprep.subr.bf16.mxu0 0
        %943 = vmatpush1.bf16.msra.mxu0 %v934
        %944 = vmatprep.subr.bf16.mxu0 0
        %945 = vmatpush1.bf16.msra.mxu0 0
        %946 = vmatprep.subr.bf16.mxu0 0
        %947 = vmatpush1.bf16.msra.mxu0 0
        %948 = vmatprep.subr.bf16.mxu0 0
        %949 = vmatpush1.bf16.msra.mxu0 0
        %950 = vmatprep.subr.bf16.mxu0 0
        %951 = vmatpush1.bf16.msra.mxu0 0
        %952 = vmatprep.subr.bf16.mxu0 0
        %953 = vmatpush1.bf16.msra.mxu0 0
        %954 = vmatprep.subr.bf16.mxu0 0
        %955 = vmatpush1.bf16.msra.mxu0 0
        %956 = vmatprep.subr.bf16.mxu0 0
        %957 = vmatpush1.bf16.msra.mxu0 0
        %958 = vmatprep.subr.bf16.mxu0 0
        %959 = vmatpush1.bf16.msra.mxu0 0
        %960 = vmatprep.subr.bf16.mxu0 0
        %961 = vmatpush1.bf16.msra.mxu0 0
        %962 = vmatprep.subr.bf16.mxu0 0
        %963 = vmatpush1.bf16.msra.mxu0 0
        %964 = vmatprep.subr.bf16.mxu0 0
        %965 = vmatpush1.bf16.msra.mxu0 0
        %966 = vmatprep.subr.bf16.mxu0 0
        %967 = vmatpush1.bf16.msra.mxu0 0
        %968 = vmatprep.subr.bf16.mxu0 0
        %969 = vmatpush1.bf16.msra.mxu0 0
        %970 = vmatprep.subr.bf16.mxu0 0
        %971 = vmatpush1.bf16.msra.mxu0 0
        %972 = vmatprep.mubr.bf16.mxu0 0
        %973 = vmatmul.mubr.bf16.gmra.mrb[0].mxu0 %v938
        %v974 = vpop.f32.mrb[0].mxu0
        %v975 = vadd.f32 %v919, %v974
        %v976 = vpop.f32.mrb[0].mxu0
        %v977 = vpop.f32.mrb[0].mxu0
        %v978 = vadd.f32 %v922, %v977
        %v979 = vpop.f32.mrb[0].mxu0
        %980 = vdwg.mxu0
        %981 = vrot.lane.b32.xlu0 %v476, 64
        %v982 = vpop.permute.xlu0 %981
        %983 = vrot.lane.b32.xlu0 %v480, 64
        %v984 = vpop.permute.xlu0 %983
        %985 = vrot.lane.b32.xlu0 %v478, 64
        %v986 = vpop.permute.xlu0 %985
        %987 = vrot.lane.b32.xlu0 %v482, 64
        %v988 = vpop.permute.xlu0 %987
        %v989 = vsel %vm532, %v982, 0
        %v991 = vsel %vm532, %v984, 0
        %v993 = vsel %vm532, %v986, 0
        %v995 = vsel %vm532, %v988, 0
        %997 = vmatprep.subr.mxu0 0.0
        %998 = vmatpush1.xpose.msra.mxu0 %v993
        %999 = vmatprep.subr.mxu0 0.0
        %1000 = vmatpush1.xpose.msra.mxu0 %v995
        %1001 = vmatprep.subr.mxu0 0.0
        %1002 = vmatpush1.xpose.msra.mxu0 0.0
        %1003 = vmatprep.subr.mxu0 0.0
        %1004 = vmatpush1.xpose.msra.mxu0 0.0
        %1005 = vmatprep.subr.mxu0 0.0
        %1006 = vmatpush1.xpose.msra.mxu0 0.0
        %1007 = vmatprep.subr.mxu0 0.0
        %1008 = vmatpush1.xpose.msra.mxu0 0.0
        %1009 = vmatprep.subr.mxu0 0.0
        %1010 = vmatpush1.xpose.msra.mxu0 0.0
        %1011 = vmatprep.subr.mxu0 0.0
        %1012 = vmatpush1.xpose.msra.mxu0 0.0
        %1013 = vmatprep.subr.mxu0 0.0
        %1014 = vmatpush1.xpose.msra.mxu0 0.0
        %1015 = vmatprep.subr.mxu0 0.0
        %1016 = vmatpush1.xpose.msra.mxu0 0.0
        %1017 = vmatprep.subr.mxu0 0.0
        %1018 = vmatpush1.xpose.msra.mxu0 0.0
        %1019 = vmatprep.subr.mxu0 0.0
        %1020 = vmatpush1.xpose.msra.mxu0 0.0
        %1021 = vmatprep.subr.mxu0 0.0
        %1022 = vmatpush1.xpose.msra.mxu0 0.0
        %1023 = vmatprep.subr.mxu0 0.0
        %1024 = vmatpush1.xpose.msra.mxu0 0.0
        %1025 = vmatprep.subr.mxu0 0.0
        %1026 = vmatpush1.xpose.msra.mxu0 0.0
        %1027 = vmatprep.subr.mxu0 0.0
        %1028 = vmatpush1.xpose.msra.mxu0 0.0
        %1029 = vmatprep.subr.mxu0 0.0
        %1030 = vmatpush1.xpose.msra.mxu0 0.0
        %1031 = vmatprep.subr.mxu0 0.0
        %1032 = vmatpush1.xpose.msra.mxu0 0.0
        %1033 = vmatprep.subr.mxu0 0.0
        %1034 = vmatpush1.xpose.msra.mxu0 0.0
        %1035 = vmatprep.subr.mxu0 0.0
        %1036 = vmatpush1.xpose.msra.mxu0 0.0
        %1037 = vmatprep.subr.mxu0 0.0
        %1038 = vmatpush1.xpose.msra.mxu0 0.0
        %1039 = vmatprep.subr.mxu0 0.0
        %1040 = vmatpush1.xpose.msra.mxu0 0.0
        %1041 = vmatprep.subr.mxu0 0.0
        %1042 = vmatpush1.xpose.msra.mxu0 0.0
        %1043 = vmatprep.subr.mxu0 0.0
        %1044 = vmatpush1.xpose.msra.mxu0 0.0
        %1045 = vmatprep.subr.mxu0 0.0
        %1046 = vmatpush1.xpose.msra.mxu0 0.0
        %1047 = vmatprep.subr.mxu0 0.0
        %1048 = vmatpush1.xpose.msra.mxu0 0.0
        %1049 = vmatprep.subr.mxu0 0.0
        %1050 = vmatpush1.xpose.msra.mxu0 0.0
        %1051 = vmatprep.subr.mxu0 0.0
        %1052 = vmatpush1.xpose.msra.mxu0 0.0
        %1053 = vmatprep.subr.mxu0 0.0
        %1054 = vmatpush1.xpose.msra.mxu0 0.0
        %1055 = vmatprep.subr.mxu0 0.0
        %1056 = vmatpush1.xpose.msra.mxu0 0.0
        %1057 = vmatprep.subr.mxu0 0.0
        %1058 = vmatpush1.xpose.msra.mxu0 0.0
        %1059 = vmatprep.subr.mxu0 0.0
        %1060 = vmatpush1.xpose.msra.mxu0 0.0
        %1061 = vmatprep.mubr.f32.mxu0 0.0
        %1062 = vmatmul.mubr.f32.gmra.mrb[0].mxu0 %v989
        %v1063 = vpop.f32.mrb[0].mxu0
        %v1064 = vadd.f32 0.0, %v1063
        %v1065 = vpop.f32.mrb[0].mxu0
        %1066 = vmatprep.mubr.f32.mxu0 0.0
        %1067 = vmatmul.mubr.f32.gmra.mrb[0].mxu0 %v991
        %v1068 = vpop.f32.mrb[0].mxu0
        %v1069 = vadd.f32 0.0, %v1068
        %v1070 = vpop.f32.mrb[0].mxu0
        %1071 = vdwg.mxu0
        %v1072 = vmul.f32 %v1064, 0.17677669
        %v1073 = vmul.f32 %v1069, 0.17677669
        %v1074 = vsel %vm530, %v1072, -1e+30
        %v1075 = vsel %vm531, %v1073, -1e+30
        %v1076 = vsel %vm624, %v1074, -inf
        %1077 = vmax.xlane.f32.xlu0 %v1076
        %v1078 = vpop.xlane.xlu0 %1077
        %v1079 = vsel %vm624, %v1075, -inf
        %1080 = vmax.xlane.f32.xlu0 %v1079
        %v1081 = vpop.xlane.xlu0 %1080
        %v1082 = vsub.f32 %v1074, %v1078
        %v1083 = vsub.f32 %v1075, %v1081
        %v1084 = vmul.f32 %v1082, 1.442695
        %v1085 = vpow.pop %v1084
        %v1086 = vmul.f32 %v1083, 1.442695
        %v1087 = vpow.pop %v1086
        %v1088 = vsel %vm624, %v1085, 0.0
        %1089 = vadd.xlane.f32.xlu0 %v1088
        %v1090 = vpop.xlane.xlu0 %1089
        %v1091 = vsel %vm624, %v1087, 0.0
        %1092 = vadd.xlane.f32.xlu0 %v1091
        %v1093 = vpop.xlane.xlu0 %1092
        %v1094 = vrcp.pop %v1090
        %v1095 = vrcp.pop %v1093
        %v1096 = vmul.f32 %v1085, %v1094
        %v1097 = vmul.f32 %v1087, %v1095
        %v1098 = vpack.c.bf16 %v1097, %v1096
        %1099 = vrot.lane.b32.xlu0 %v648, 64
        %v1100 = vpop.permute.xlu0 %1099
        %v1103 = vsel %vm624, %v1098, 0
        %1105 = vmatprep.subr.bf16.mxu0 0
        %1106 = vmatpush1.bf16.msra.mxu0 %v1100
        %1107 = vmatprep.subr.bf16.mxu0 0
        %1108 = vmatpush1.bf16.msra.mxu0 0
        %1109 = vmatprep.subr.bf16.mxu0 0
        %1110 = vmatpush1.bf16.msra.mxu0 0
        %1111 = vmatprep.subr.bf16.mxu0 0
        %1112 = vmatpush1.bf16.msra.mxu0 0
        %1113 = vmatprep.subr.bf16.mxu0 0
        %1114 = vmatpush1.bf16.msra.mxu0 0
        %1115 = vmatprep.subr.bf16.mxu0 0
        %1116 = vmatpush1.bf16.msra.mxu0 0
        %1117 = vmatprep.subr.bf16.mxu0 0
        %1118 = vmatpush1.bf16.msra.mxu0 0
        %1119 = vmatprep.subr.bf16.mxu0 0
        %1120 = vmatpush1.bf16.msra.mxu0 0
        %1121 = vmatprep.subr.bf16.mxu0 0
        %1122 = vmatpush1.bf16.msra.mxu0 0
        %1123 = vmatprep.subr.bf16.mxu0 0
        %1124 = vmatpush1.bf16.msra.mxu0 0
        %1125 = vmatprep.subr.bf16.mxu0 0
        %1126 = vmatpush1.bf16.msra.mxu0 0
        %1127 = vmatprep.subr.bf16.mxu0 0
        %1128 = vmatpush1.bf16.msra.mxu0 0
        %1129 = vmatprep.subr.bf16.mxu0 0
        %1130 = vmatpush1.bf16.msra.mxu0 0
        %1131 = vmatprep.subr.bf16.mxu0 0
        %1132 = vmatpush1.bf16.msra.mxu0 0
        %1133 = vmatprep.subr.bf16.mxu0 0
        %1134 = vmatpush1.bf16.msra.mxu0 0
        %1135 = vmatprep.subr.bf16.mxu0 0
        %1136 = vmatpush1.bf16.msra.mxu0 0
        %1137 = vmatprep.mubr.bf16.mxu0 0
        %1138 = vmatmul.mubr.bf16.gmra.mrb[0].mxu0 %v1103
        %v1139 = vpop.f32.mrb[0].mxu0
        %v1140 = vadd.f32 0.0, %v1139
        %v1141 = vpop.f32.mrb[0].mxu0
        %v1142 = vpop.f32.mrb[0].mxu0
        %v1143 = vadd.f32 0.0, %v1142
        %v1144 = vpop.f32.mrb[0].mxu0
        %1145 = vdwg.mxu0
        %v1146 = vpack.c.bf16 %v1143, %v1140
        %v1147 = vld [vmem:[#allocation7 + $0x20] sm:$0xf]
        %v1148 = vld [vmem:[#allocation7 + $0x24] sm:$0xf]
        %v1149 = vld [vmem:[#allocation7 + $0x28] sm:$0xf]
        %v1150 = vld [vmem:[#allocation7 + $0x2c] sm:$0xf]
        %v1155 = vunpack.c.l.b16 %v1147
        %v1156 = vunpack.c.l.b16 %v1148
        %v1157 = vunpack.c.l.b16 %v1149
        %v1158 = vunpack.c.l.b16 %v1150
        %v1159 = vpack.c.b16 %v1156, %v1155
        %v1160 = vpack.c.b16 %v1158, %v1157
        %v1164 = vsel %vm532, %v1146, 0
        %1166 = vmatprep.subr.bf16.mxu0 0
        %1167 = vmatpush1.bf16.msra.mxu0 %v1159
        %1168 = vmatprep.subr.bf16.mxu0 0
        %1169 = vmatpush1.bf16.msra.mxu0 %v1160
        %1170 = vmatprep.subr.bf16.mxu0 0
        %1171 = vmatpush1.bf16.msra.mxu0 0
        %1172 = vmatprep.subr.bf16.mxu0 0
        %1173 = vmatpush1.bf16.msra.mxu0 0
        %1174 = vmatprep.subr.bf16.mxu0 0
        %1175 = vmatpush1.bf16.msra.mxu0 0
        %1176 = vmatprep.subr.bf16.mxu0 0
        %1177 = vmatpush1.bf16.msra.mxu0 0
        %1178 = vmatprep.subr.bf16.mxu0 0
        %1179 = vmatpush1.bf16.msra.mxu0 0
        %1180 = vmatprep.subr.bf16.mxu0 0
        %1181 = vmatpush1.bf16.msra.mxu0 0
        %1182 = vmatprep.subr.bf16.mxu0 0
        %1183 = vmatpush1.bf16.msra.mxu0 0
        %1184 = vmatprep.subr.bf16.mxu0 0
        %1185 = vmatpush1.bf16.msra.mxu0 0
        %1186 = vmatprep.subr.bf16.mxu0 0
        %1187 = vmatpush1.bf16.msra.mxu0 0
        %1188 = vmatprep.subr.bf16.mxu0 0
        %1189 = vmatpush1.bf16.msra.mxu0 0
        %1190 = vmatprep.subr.bf16.mxu0 0
        %1191 = vmatpush1.bf16.msra.mxu0 0
        %1192 = vmatprep.subr.bf16.mxu0 0
        %1193 = vmatpush1.bf16.msra.mxu0 0
        %1194 = vmatprep.subr.bf16.mxu0 0
        %1195 = vmatpush1.bf16.msra.mxu0 0
        %1196 = vmatprep.subr.bf16.mxu0 0
        %1197 = vmatpush1.bf16.msra.mxu0 0
        %1198 = vmatprep.mubr.bf16.mxu0 0
        %1199 = vmatmul.mubr.bf16.gmra.mrb[0].mxu0 %v1164
        %v1200 = vpop.f32.mrb[0].mxu0
        %v1201 = vadd.f32 0.0, %v1200
        %v1202 = vpop.f32.mrb[0].mxu0
        %v1203 = vpop.f32.mrb[0].mxu0
        %v1204 = vadd.f32 0.0, %v1203
        %v1205 = vpop.f32.mrb[0].mxu0
        %1206 = vdwg.mxu0
        %v1207 = vadd.f32 %v975, %v1201
        %v1208 = vadd.f32 %v978, %v1204
        %1209 = vrot.lane.b32.xlu0 %v476, 32
        %v1210 = vpop.permute.xlu0 %1209
        %1211 = vrot.lane.b32.xlu0 %v480, 32
        %v1212 = vpop.permute.xlu0 %1211
        %1213 = vrot.lane.b32.xlu0 %v478, 32
        %v1214 = vpop.permute.xlu0 %1213
        %1215 = vrot.lane.b32.xlu0 %v482, 32
        %v1216 = vpop.permute.xlu0 %1215
        %v1217 = vsel %vm532, %v1210, 0
        %v1219 = vsel %vm532, %v1212, 0
        %v1221 = vsel %vm532, %v1214, 0
        %v1223 = vsel %vm532, %v1216, 0
        %1225 = vmatprep.subr.mxu0 0.0
        %1226 = vmatpush1.xpose.msra.mxu0 %v1221
        %1227 = vmatprep.subr.mxu0 0.0
        %1228 = vmatpush1.xpose.msra.mxu0 %v1223
        %1229 = vmatprep.subr.mxu0 0.0
        %1230 = vmatpush1.xpose.msra.mxu0 0.0
        %1231 = vmatprep.subr.mxu0 0.0
        %1232 = vmatpush1.xpose.msra.mxu0 0.0
        %1233 = vmatprep.subr.mxu0 0.0
        %1234 = vmatpush1.xpose.msra.mxu0 0.0
        %1235 = vmatprep.subr.mxu0 0.0
        %1236 = vmatpush1.xpose.msra.mxu0 0.0
        %1237 = vmatprep.subr.mxu0 0.0
        %1238 = vmatpush1.xpose.msra.mxu0 0.0
        %1239 = vmatprep.subr.mxu0 0.0
        %1240 = vmatpush1.xpose.msra.mxu0 0.0
        %1241 = vmatprep.subr.mxu0 0.0
        %1242 = vmatpush1.xpose.msra.mxu0 0.0
        %1243 = vmatprep.subr.mxu0 0.0
        %1244 = vmatpush1.xpose.msra.mxu0 0.0
        %1245 = vmatprep.subr.mxu0 0.0
        %1246 = vmatpush1.xpose.msra.mxu0 0.0
        %1247 = vmatprep.subr.mxu0 0.0
        %1248 = vmatpush1.xpose.msra.mxu0 0.0
        %1249 = vmatprep.subr.mxu0 0.0
        %1250 = vmatpush1.xpose.msra.mxu0 0.0
        %1251 = vmatprep.subr.mxu0 0.0
        %1252 = vmatpush1.xpose.msra.mxu0 0.0
        %1253 = vmatprep.subr.mxu0 0.0
        %1254 = vmatpush1.xpose.msra.mxu0 0.0
        %1255 = vmatprep.subr.mxu0 0.0
        %1256 = vmatpush1.xpose.msra.mxu0 0.0
        %1257 = vmatprep.subr.mxu0 0.0
        %1258 = vmatpush1.xpose.msra.mxu0 0.0
        %1259 = vmatprep.subr.mxu0 0.0
        %1260 = vmatpush1.xpose.msra.mxu0 0.0
        %1261 = vmatprep.subr.mxu0 0.0
        %1262 = vmatpush1.xpose.msra.mxu0 0.0
        %1263 = vmatprep.subr.mxu0 0.0
        %1264 = vmatpush1.xpose.msra.mxu0 0.0
        %1265 = vmatprep.subr.mxu0 0.0
        %1266 = vmatpush1.xpose.msra.mxu0 0.0
        %1267 = vmatprep.subr.mxu0 0.0
        %1268 = vmatpush1.xpose.msra.mxu0 0.0
        %1269 = vmatprep.subr.mxu0 0.0
        %1270 = vmatpush1.xpose.msra.mxu0 0.0
        %1271 = vmatprep.subr.mxu0 0.0
        %1272 = vmatpush1.xpose.msra.mxu0 0.0
        %1273 = vmatprep.subr.mxu0 0.0
        %1274 = vmatpush1.xpose.msra.mxu0 0.0
        %1275 = vmatprep.subr.mxu0 0.0
        %1276 = vmatpush1.xpose.msra.mxu0 0.0
        %1277 = vmatprep.subr.mxu0 0.0
        %1278 = vmatpush1.xpose.msra.mxu0 0.0
        %1279 = vmatprep.subr.mxu0 0.0
        %1280 = vmatpush1.xpose.msra.mxu0 0.0
        %1281 = vmatprep.subr.mxu0 0.0
        %1282 = vmatpush1.xpose.msra.mxu0 0.0
        %1283 = vmatprep.subr.mxu0 0.0
        %1284 = vmatpush1.xpose.msra.mxu0 0.0
        %1285 = vmatprep.subr.mxu0 0.0
        %1286 = vmatpush1.xpose.msra.mxu0 0.0
        %1287 = vmatprep.subr.mxu0 0.0
        %1288 = vmatpush1.xpose.msra.mxu0 0.0
        %1289 = vmatprep.mubr.f32.mxu0 0.0
        %1290 = vmatmul.mubr.f32.gmra.mrb[0].mxu0 %v1217
        %v1291 = vpop.f32.mrb[0].mxu0
        %v1292 = vadd.f32 0.0, %v1291
        %v1293 = vpop.f32.mrb[0].mxu0
        %1294 = vmatprep.mubr.f32.mxu0 0.0
        %1295 = vmatmul.mubr.f32.gmra.mrb[0].mxu0 %v1219
        %v1296 = vpop.f32.mrb[0].mxu0
        %v1297 = vadd.f32 0.0, %v1296
        %v1298 = vpop.f32.mrb[0].mxu0
        %1299 = vdwg.mxu0
        %v1300 = vmul.f32 %v1292, 0.17677669
        %v1301 = vmul.f32 %v1297, 0.17677669
        %v1302 = vsel %vm530, %v1300, -1e+30
        %v1303 = vsel %vm531, %v1301, -1e+30
        %v1304 = vsel %vm624, %v1302, -inf
        %1305 = vmax.xlane.f32.xlu0 %v1304
        %v1306 = vpop.xlane.xlu0 %1305
        %v1307 = vsel %vm624, %v1303, -inf
        %1308 = vmax.xlane.f32.xlu0 %v1307
        %v1309 = vpop.xlane.xlu0 %1308
        %v1310 = vsub.f32 %v1302, %v1306
        %v1311 = vsub.f32 %v1303, %v1309
        %v1312 = vmul.f32 %v1310, 1.442695
        %v1313 = vpow.pop %v1312
        %v1314 = vmul.f32 %v1311, 1.442695
        %v1315 = vpow.pop %v1314
        %v1316 = vsel %vm624, %v1313, 0.0
        %1317 = vadd.xlane.f32.xlu0 %v1316
        %v1318 = vpop.xlane.xlu0 %1317
        %v1319 = vsel %vm624, %v1315, 0.0
        %1320 = vadd.xlane.f32.xlu0 %v1319
        %v1321 = vpop.xlane.xlu0 %1320
        %v1322 = vrcp.pop %v1318
        %v1323 = vrcp.pop %v1321
        %v1324 = vmul.f32 %v1313, %v1322
        %v1325 = vmul.f32 %v1315, %v1323
        %v1326 = vpack.c.bf16 %v1325, %v1324
        %1327 = vrot.lane.b32.xlu0 %v648, 32
        %v1328 = vpop.permute.xlu0 %1327
        %v1331 = vsel %vm624, %v1326, 0
        %1333 = vmatprep.subr.bf16.mxu0 0
        %1334 = vmatpush1.bf16.msra.mxu0 %v1328
        %1335 = vmatprep.subr.bf16.mxu0 0
        %1336 = vmatpush1.bf16.msra.mxu0 0
        %1337 = vmatprep.subr.bf16.mxu0 0
        %1338 = vmatpush1.bf16.msra.mxu0 0
        %1339 = vmatprep.subr.bf16.mxu0 0
        %1340 = vmatpush1.bf16.msra.mxu0 0
        %1341 = vmatprep.subr.bf16.mxu0 0
        %1342 = vmatpush1.bf16.msra.mxu0 0
        %1343 = vmatprep.subr.bf16.mxu0 0
        %1344 = vmatpush1.bf16.msra.mxu0 0
        %1345 = vmatprep.subr.bf16.mxu0 0
        %1346 = vmatpush1.bf16.msra.mxu0 0
        %1347 = vmatprep.subr.bf16.mxu0 0
        %1348 = vmatpush1.bf16.msra.mxu0 0
        %1349 = vmatprep.subr.bf16.mxu0 0
        %1350 = vmatpush1.bf16.msra.mxu0 0
        %1351 = vmatprep.subr.bf16.mxu0 0
        %1352 = vmatpush1.bf16.msra.mxu0 0
        %1353 = vmatprep.subr.bf16.mxu0 0
        %1354 = vmatpush1.bf16.msra.mxu0 0
        %1355 = vmatprep.subr.bf16.mxu0 0
        %1356 = vmatpush1.bf16.msra.mxu0 0
        %1357 = vmatprep.subr.bf16.mxu0 0
        %1358 = vmatpush1.bf16.msra.mxu0 0
        %1359 = vmatprep.subr.bf16.mxu0 0
        %1360 = vmatpush1.bf16.msra.mxu0 0
        %1361 = vmatprep.subr.bf16.mxu0 0
        %1362 = vmatpush1.bf16.msra.mxu0 0
        %1363 = vmatprep.subr.bf16.mxu0 0
        %1364 = vmatpush1.bf16.msra.mxu0 0
        %1365 = vmatprep.mubr.bf16.mxu0 0
        %1366 = vmatmul.mubr.bf16.gmra.mrb[0].mxu0 %v1331
        %v1367 = vpop.f32.mrb[0].mxu0
        %v1368 = vadd.f32 0.0, %v1367
        %v1369 = vpop.f32.mrb[0].mxu0
        %v1370 = vpop.f32.mrb[0].mxu0
        %v1371 = vadd.f32 0.0, %v1370
        %v1372 = vpop.f32.mrb[0].mxu0
        %1373 = vdwg.mxu0
        %v1374 = vpack.c.bf16 %v1371, %v1368
        %v1375 = vld [vmem:[#allocation7 + $0x30] sm:$0xf]
        %v1376 = vld [vmem:[#allocation7 + $0x34] sm:$0xf]
        %v1377 = vld [vmem:[#allocation7 + $0x38] sm:$0xf]
        %v1378 = vld [vmem:[#allocation7 + $0x3c] sm:$0xf]
        %v1383 = vunpack.c.l.b16 %v1375
        %v1384 = vunpack.c.l.b16 %v1376
        %v1385 = vunpack.c.l.b16 %v1377
        %v1386 = vunpack.c.l.b16 %v1378
        %v1387 = vpack.c.b16 %v1384, %v1383
        %v1388 = vpack.c.b16 %v1386, %v1385
        %v1392 = vsel %vm532, %v1374, 0
        %1394 = vmatprep.subr.bf16.mxu0 0
        %1395 = vmatpush1.bf16.msra.mxu0 %v1387
        %1396 = vmatprep.subr.bf16.mxu0 0
        %1397 = vmatpush1.bf16.msra.mxu0 %v1388
        %1398 = vmatprep.subr.bf16.mxu0 0
        %1399 = vmatpush1.bf16.msra.mxu0 0
        %1400 = vmatprep.subr.bf16.mxu0 0
        %1401 = vmatpush1.bf16.msra.mxu0 0
        %1402 = vmatprep.subr.bf16.mxu0 0
        %1403 = vmatpush1.bf16.msra.mxu0 0
        %1404 = vmatprep.subr.bf16.mxu0 0
        %1405 = vmatpush1.bf16.msra.mxu0 0
        %1406 = vmatprep.subr.bf16.mxu0 0
        %1407 = vmatpush1.bf16.msra.mxu0 0
        %1408 = vmatprep.subr.bf16.mxu0 0
        %1409 = vmatpush1.bf16.msra.mxu0 0
        %1410 = vmatprep.subr.bf16.mxu0 0
        %1411 = vmatpush1.bf16.msra.mxu0 0
        %1412 = vmatprep.subr.bf16.mxu0 0
        %1413 = vmatpush1.bf16.msra.mxu0 0
        %1414 = vmatprep.subr.bf16.mxu0 0
        %1415 = vmatpush1.bf16.msra.mxu0 0
        %1416 = vmatprep.subr.bf16.mxu0 0
        %1417 = vmatpush1.bf16.msra.mxu0 0
        %1418 = vmatprep.subr.bf16.mxu0 0
        %1419 = vmatpush1.bf16.msra.mxu0 0
        %1420 = vmatprep.subr.bf16.mxu0 0
        %1421 = vmatpush1.bf16.msra.mxu0 0
        %1422 = vmatprep.subr.bf16.mxu0 0
        %1423 = vmatpush1.bf16.msra.mxu0 0
        %1424 = vmatprep.subr.bf16.mxu0 0
        %1425 = vmatpush1.bf16.msra.mxu0 0
        %1426 = vmatprep.mubr.bf16.mxu0 0
        %1427 = vmatmul.mubr.bf16.gmra.mrb[0].mxu0 %v1392
        %v1428 = vpop.f32.mrb[0].mxu0
        %v1429 = vadd.f32 0.0, %v1428
        %v1430 = vpop.f32.mrb[0].mxu0
        %v1431 = vpop.f32.mrb[0].mxu0
        %v1432 = vadd.f32 0.0, %v1431
        %v1433 = vpop.f32.mrb[0].mxu0
        %1434 = vdwg.mxu0
        %v1435 = vadd.f32 %v1207, %v1429
        %v1436 = vadd.f32 %v1208, %v1432
        %v1437 = vadd.f32 %v246, %v1435
        %v1438 = vadd.f32 %v247, %v1436
        %1439 = vst [vmem:[%s244] sm:$0xff] %v1437
        %1440 = vst [vmem:[%s244 + $0x8] sm:$0xff] %v1438
        %s1441 = sand.u32 %s119, 1
        %s1442 = scalar_lea.sflag [#allocation4], %s1441
        %s1443 = sand.u32 %s119, 1
        %s1444 = smul.addr %s1443, 16
        %s1445 = scalar_lea.vmem [#allocation8], %s1444
        // Predicated region
        $region49: #{tpu_custom_call.1} parent=35 // pred_check
          %p1446 = pneg %p129
        $region50: #{tpu_custom_call.1} parent=35 // pred_check_branch
          %1448 = sbr.rel (%p1446) target = $region52
        $region51: #{tpu_custom_call.1} parent=35 // pred_region
          %s1450 = ssub.s32 256, 256
          %1451 = vsyncadd %s1442, %s1450
          %s1452 = smul.addr %s22, 2
          %s1453 = smul.addr %s1452, 128
          %s1454 = scalar_lea.hbm %s4, %s1453
          %s1455 = sshll.u32 %s1445, 4
          %s1456 = int_to_ptr.vmem [resolvable:$true] %s1455
          %1461 = dma.vmem_to_hbm [thread:$0]  %s1456, 256, %s1454, %s1442, 128, 128, 8
        $region52: #{tpu_custom_call.1} parent=35 // pred_fallthru
          _
      $region36: #{tpu_custom_call.1} parent=5 // pred_fallthru
        _
      %p1462 = scmp.le.s32.totalorder 2, %s17
      // Predicated region
      $region53: #{tpu_custom_call.1} parent=5 // pred_check
        %p1463 = pneg %p1462
      $region54: #{tpu_custom_call.1} parent=5 // pred_check_branch
        %1465 = sbr.rel (%p1463) target = $region56
      $region55: #{tpu_custom_call.1} parent=5 // pred_region
        %s1466 = ssub.s32 %s17, 2
        // Predicated region
        $region57: #{tpu_custom_call.1} parent=55 // pred_check
          %p1467 = pneg %p135
        $region58: #{tpu_custom_call.1} parent=55 // pred_check_branch
          %1469 = sbr.rel (%p1467) target = $region60
        $region59: #{tpu_custom_call.1} parent=55 // pred_region
          %s1470 = sand.u32 %s120, 1
          %s1471 = scalar_lea.sflag [#allocation4], %s1470
          %s1472 = sand.u32 %s120, 1
          %s1473 = smul.addr %s1472, 16
          %s1474 = scalar_lea.vmem [#allocation8], %s1473
          %1475 = dma.done %s1471, 256
        $region60: #{tpu_custom_call.1} parent=55 // pred_fallthru
          _
      $region56: #{tpu_custom_call.1} parent=5 // pred_fallthru
        _
    $region6: #{tpu_custom_call.1} parent=1 // loop_footer
      %s21 = sadd.s32 1, %s17
    $region7: #{tpu_custom_call.1} parent=1 // loop_footer_branch
      %16 = sbr.rel target = $region3
    $region8: #{tpu_custom_call.1} parent=1 // loop_exit
      _
    %1476 = vsyncpa [#allocation3], 1
    %s1477 = scalar_lea.sflag [#allocation3], 1
    %1478 = vsyncpa %s1477, 1
    %1479 = vsyncpa [#allocation6], 1
    %1480 = vsyncpa [#allocation4], 1
    %s1481 = scalar_lea.sflag [#allocation4], 1
    %1482 = vsyncpa %s1481, 1

</llo_original>
